<compile_context>
chip_gen: v7x
topology: tpu7x:2x2x1
jax: 0.10.0
libtpu: 0.0.40
codegen_flags: <defaults>
</compile_context>

<pallas_src>
import jax
import jax.numpy as jnp
from jax.experimental import pallas as pl
from jax.experimental.pallas import tpu as pltpu

# ---- problem sizes (small, synthetic) --------------------------------------
N_NODES   = 16        # nodes
N_EDGES   = 256       # edges
F_IN      = 32        # input_dim
D_OUT     = 16        # output_dim
H_HEADS   = 4         # num_heads
HD        = D_OUT * H_HEADS          # 64
N_ETYPES  = 3         # num_etypes
NEG_SLOPE = 0.2       # LeakyReLU negative_slope

HD_PAD    = 128       # lane-dense output / weight width (pad 64 -> 128)
K_PAD     = 128       # feature (K) axis padded to one lane tile
H_PAD     = 8         # per-head axis padded to one f32 sublane tile

# bf16 operands on TPU (full-rate MXU); f32 on the CPU/interpret fallback.
_MM_DTYPE = jnp.bfloat16 if jax.default_backend() == "tpu" else jnp.float32


# ---- Pallas kernel ----------------------------------------------------------
def hetsann_kernel(src_ref, et_ref, dst_ref, ew_ref, featp_ref, wpack_ref,
                   mt_ref, wres_ref, bres_ref, out_ref):
    mm = featp_ref.dtype
    featp = featp_ref[...]                                       # [N, 128]

    # (1) Node-side typed projection: FW[t*N + n, :] = feat[n] @ W_pack[t].
    #     W_pack carries, per type, the D-major TypedLinear weight (cols 0..63)
    #     AND the folded attention weights W @ (a_l + a_r) @ head-sum
    #     (cols 64..67), so the attention logits ride along for free.
    fw = jnp.concatenate(
        [jnp.dot(featp, wpack_ref[t], preferred_element_type=jnp.float32)
         for t in range(N_ETYPES)], axis=0)                      # [T*N, 128] f32
    fw = fw.astype(mm)

    # (2) Edge-side gather + per-edge-type selection as ONE matmul.
    #     GT[e, t*N + n] = (etype[e] == t) & (src[e] == n), so GT @ FW picks
    #     row etype[e]*N + src[e]  ==  feat[src[e]] @ W_pack[etype[e]].
    sel = et_ref[...] * N_NODES + src_ref[...]                   # [E, 1] int32
    gt = (jax.lax.broadcasted_iota(jnp.int32, (N_EDGES, N_ETYPES * N_NODES), 1)
          == sel).astype(mm)                                     # [E, T*N]
    h_full = jnp.dot(gt, fw, preferred_element_type=jnp.float32)  # [E, 128]
    # cols 0..63: h (D-major) | cols 64..67: attention logits | 68..127: zero
    # TODO(synk): nn.Dropout between W and a_l/a_r is an inference-time no-op, omitted.

    # (3) Attention: LeakyReLU -> sigmoid -> * edge_weight (f32 VPU/EUP path).
    s = h_full[:, HD:HD + H_PAD]                                 # [E, 8]
    s = jnp.where(s > 0, s, NEG_SLOPE * s)
    att = jax.nn.sigmoid(s) * ew_ref[...]                        # [E, 8]

    # (4) Per-head -> per-(d*H+head) column expansion.  MT is a 0/1 matrix so
    #     mm-dtype operands are exact; its zero rows (>= H) mask the garbage
    #     att columns 4..7 and its zero cols (>= HD) mask the logit/padding
    #     columns of h_full out of the scatter.
    att_exp = jnp.dot(att.astype(mm), mt_ref[...],
                      preferred_element_type=jnp.float32)        # [E, 128]
    weighted = (h_full * att_exp).astype(mm)                     # alpha [E, 128]

    # (5) Fused scatter-add over destination nodes + residual Linear, as one
    #     K-concatenated matmul:  [S | feat_pad] @ [weighted ; Wres_pad].
    n_iota = jax.lax.broadcasted_iota(jnp.int32, (N_NODES, N_EDGES), 0)
    scat = (n_iota == dst_ref[...]).astype(mm)                   # [N, E]
    lhs = jnp.concatenate([scat, featp], axis=1)                 # [N, E+128]
    rhs = jnp.concatenate([weighted, wres_ref[...]], axis=0)     # [E+128, 128]
    y = jnp.dot(lhs, rhs, preferred_element_type=jnp.float32) + bres_ref[...]

    # (6) ELU (alpha=1); min() keeps the untaken exp branch finite.
    out_ref[...] = jnp.where(y > 0, y, jnp.exp(jnp.minimum(y, 0.0)) - 1.0)


# ---- wrapper ----------------------------------------------------------------
@jax.jit
def hetsann_forward(feat, src, dst, edge_weight, etype_idxs,
                    W, AL, AR, Wres, bres):
    P = jax.lax.Precision.HIGHEST
    f32 = jnp.float32
    mm = _MM_DTYPE

    # ---- one-time weight folding (exact algebra, full f32; in a real model
    #      this would be precomputed once at load time) ----------------------
    # head-major -> D-major column permutation so the kernel writes output order.
    W_dm = W.reshape(N_ETYPES, F_IN, H_HEADS, D_OUT).transpose(0, 1, 3, 2) \
            .reshape(N_ETYPES, F_IN, HD)
    # Attention logits folded through W: WA[t] = W[t] @ (AL[t]+AR[t]) @ M_red,
    # where M_red is the per-head column sum (head-major).
    M_red = (jnp.arange(HD)[:, None] // D_OUT ==
             jnp.arange(H_HEADS)[None, :]).astype(f32)             # [HD, H]
    WA = jnp.matmul(W, jnp.matmul(AL + AR, M_red, precision=P),
                    precision=P)                                   # [T, F_IN, H]

    # Packed per-type weight: cols 0..63 = W_dm, cols 64..67 = WA, rest zero;
    # rows F_IN..127 zero (K axis padded to 128 so everything is lane-aligned).
    W_pack = jnp.zeros((N_ETYPES, K_PAD, HD_PAD), f32)
    W_pack = W_pack.at[:, :F_IN, :HD].set(W_dm)
    W_pack = W_pack.at[:, :F_IN, HD:HD + H_HEADS].set(WA)
    W_pack = W_pack.astype(mm)

    # per-head -> per-column (D-major) expansion matrix (0/1, exact in bf16).
    r = jnp.arange(H_PAD)[:, None]
    c = jnp.arange(HD_PAD)[None, :]
    MT = ((r == c % H_HEADS) & (c < HD) & (r < H_HEADS)).astype(mm)  # [8, 128]

    Wres_p = jnp.zeros((K_PAD, HD_PAD), f32).at[:F_IN, :HD].set(Wres).astype(mm)
    bres_p = jnp.zeros((1, HD_PAD), f32).at[:, :HD].set(bres)        # f32
    feat_p = jnp.zeros((N_NODES, K_PAD), f32).at[:, :F_IN].set(feat).astype(mm)

    # ---- raw edge data: the gather / one-hot / scatter matrices are built
    #      in-kernel from these tiny int vectors (no wrapper prep ops) -------
    src2 = src.astype(jnp.int32).reshape(N_EDGES, 1)
    et2  = etype_idxs.astype(jnp.int32).reshape(N_EDGES, 1)
    dstT = dst.astype(jnp.int32).reshape(1, N_EDGES)
    ew2  = edge_weight.astype(f32).reshape(N_EDGES, 1)

    vmem = pl.BlockSpec(memory_space=pltpu.MemorySpace.VMEM)  # full-array VMEM blocks
    out_p = pl.pallas_call(
        hetsann_kernel,
        out_shape=jax.ShapeDtypeStruct((N_NODES, HD_PAD), jnp.float32),
        in_specs=[vmem] * 9,
        out_specs=vmem,
    )(src2, et2, dstT, ew2, feat_p, W_pack, MT, Wres_p, bres_p)

    # columns are already D-major (PyTorch order); just drop the lane padding.
    return out_p[:, :HD]


# ---- pure-JAX reference (matches the PyTorch forward, full f32) --------------
def hetsann_reference(feat, src, dst, edge_weight, etype_idxs, W, AL, AR, Wres, bres):
    P = jax.lax.Precision.HIGHEST
    hsrc = feat[src]                                                     # copy_u
    h = jnp.einsum('ef,efo->eo', hsrc, W[etype_idxs], precision=P)       # TypedLinear W
    hl = jnp.einsum('eo,eop->ep', h, AL[etype_idxs], precision=P) \
            .reshape(-1, H_HEADS, D_OUT).sum(-1)
    hr = jnp.einsum('eo,eop->ep', h, AR[etype_idxs], precision=P) \
            .reshape(-1, H_HEADS, D_OUT).sum(-1)
    e = hl + hr
    att = jax.nn.sigmoid(jnp.where(e > 0, e, NEG_SLOPE * e)) * edge_weight[:, None]
    h3 = jnp.transpose(h.reshape(-1, H_HEADS, D_OUT), (0, 2, 1))         # [E, D, H]
    alpha = h3 * att[:, None, :]
    emb = jnp.zeros((N_NODES, D_OUT, H_HEADS), jnp.float32).at[dst].add(alpha)
    out = emb.reshape(N_NODES, HD) + jnp.matmul(feat, Wres, precision=P) + bres[0]
    return jnp.where(out > 0, out, jnp.exp(out) - 1.0)                   # ELU


if __name__ == "__main__":
    key = jax.random.PRNGKey(0)
    k_feat, k_src, k_dst, k_ew, k_et, k_w, k_al, k_ar, k_wr, k_br = jax.random.split(key, 10)

    feat = jax.random.normal(k_feat, (N_NODES, F_IN), jnp.float32)
    src = jax.random.randint(k_src, (N_EDGES,), 0, N_NODES)
    dst = jax.random.randint(k_dst, (N_EDGES,), 0, N_NODES)
    edge_weight = jax.random.uniform(k_ew, (N_EDGES,), jnp.float32)
    etype_idxs = jax.random.randint(k_et, (N_EDGES,), 0, N_ETYPES)

    # parameters (TypedLinear weight stacks + residual Linear)
    W    = jax.random.normal(k_w,  (N_ETYPES, F_IN, HD), jnp.float32) * 0.1
    AL   = jax.random.normal(k_al, (N_ETYPES, HD, HD), jnp.float32) * 0.1
    AR   = jax.random.normal(k_ar, (N_ETYPES, HD, HD), jnp.float32) * 0.1
    Wres = jax.random.normal(k_wr, (F_IN, HD), jnp.float32) * 0.1
    bres = jax.random.normal(k_br, (1, HD), jnp.float32) * 0.1

    out = hetsann_forward(feat, src, dst, edge_weight, etype_idxs, W, AL, AR, Wres, bres)
    out = jax.block_until_ready(out)

    ref = hetsann_reference(feat, src, dst, edge_weight, etype_idxs, W, AL, AR, Wres, bres)
    assert out.shape == (N_NODES, HD)
    # bf16 MXU operands on TPU vs. a full-f32 reference -> bf16-class tolerance;
    # the f32 fallback path (no TPU) is compared tighter.
    tol = 2e-2 if _MM_DTYPE == jnp.bfloat16 else 1e-3
    assert jnp.allclose(out, ref, rtol=tol, atol=tol), \
        f"max abs err = {jnp.max(jnp.abs(out - ref))}"

    print("KERNEL_OK")
</pallas_src>

<mosaic_0001>
module attributes {stable_mosaic.version = 11 : i64} {
  func.func @hetsann_kernel(%arg0: memref<256x1xi32, #tpu.memory_space<vmem>>, %arg1: memref<256x1xi32, #tpu.memory_space<vmem>>, %arg2: memref<1x256xi32, #tpu.memory_space<vmem>>, %arg3: memref<256x1xf32, #tpu.memory_space<vmem>>, %arg4: memref<16x128xf32, #tpu.memory_space<vmem>>, %arg5: memref<3x128x128xf32, #tpu.memory_space<vmem>>, %arg6: memref<8x128xf32, #tpu.memory_space<vmem>>, %arg7: memref<128x128xf32, #tpu.memory_space<vmem>>, %arg8: memref<1x128xf32, #tpu.memory_space<vmem>>, %arg9: memref<16x128xf32, #tpu.memory_space<vmem>>) attributes {dimension_semantics = [], scalar_prefetch = 0 : i64, scratch_operands = 0 : i64, tpu.core_type = #tpu.core_type<tc>} {
    %c0 = arith.constant 0 : index
    %c0_0 = arith.constant 0 : index
    %0 = vector.load %arg4[%c0, %c0_0] : memref<16x128xf32, #tpu.memory_space<vmem>>, vector<16x128xf32>
    %c0_1 = arith.constant 0 : index
    %c0_2 = arith.constant 0 : index
    %c0_3 = arith.constant 0 : index
    %1 = vector.load %arg5[%c0_1, %c0_2, %c0_3] : memref<3x128x128xf32, #tpu.memory_space<vmem>>, vector<1x128x128xf32>
    %2 = vector.shape_cast %1 : vector<1x128x128xf32> to vector<128x128xf32>
    %cst = arith.constant dense<0.000000e+00> : vector<16x128xf32>
    %3 = tpu.matmul %0, %2, %cst {dimension_numbers = #tpu.dot_dimension_numbers<[1], [0], [0], [1], [0, 0, 1, 1], [], []>} : vector<16x128xf32>, vector<128x128xf32>, vector<16x128xf32> -> vector<16x128xf32>
    %c1 = arith.constant 1 : index
    %c0_4 = arith.constant 0 : index
    %c0_5 = arith.constant 0 : index
    %4 = vector.load %arg5[%c1, %c0_4, %c0_5] : memref<3x128x128xf32, #tpu.memory_space<vmem>>, vector<1x128x128xf32>
    %5 = vector.shape_cast %4 : vector<1x128x128xf32> to vector<128x128xf32>
    %cst_6 = arith.constant dense<0.000000e+00> : vector<16x128xf32>
    %6 = tpu.matmul %0, %5, %cst_6 {dimension_numbers = #tpu.dot_dimension_numbers<[1], [0], [0], [1], [0, 0, 1, 1], [], []>} : vector<16x128xf32>, vector<128x128xf32>, vector<16x128xf32> -> vector<16x128xf32>
    %c2 = arith.constant 2 : index
    %c0_7 = arith.constant 0 : index
    %c0_8 = arith.constant 0 : index
    %7 = vector.load %arg5[%c2, %c0_7, %c0_8] : memref<3x128x128xf32, #tpu.memory_space<vmem>>, vector<1x128x128xf32>
    %8 = vector.shape_cast %7 : vector<1x128x128xf32> to vector<128x128xf32>
    %cst_9 = arith.constant dense<0.000000e+00> : vector<16x128xf32>
    %9 = tpu.matmul %0, %8, %cst_9 {dimension_numbers = #tpu.dot_dimension_numbers<[1], [0], [0], [1], [0, 0, 1, 1], [], []>} : vector<16x128xf32>, vector<128x128xf32>, vector<16x128xf32> -> vector<16x128xf32>
    %10 = tpu.concatenate %3, %6, %9 in 0 : vector<16x128xf32>, vector<16x128xf32>, vector<16x128xf32> -> vector<48x128xf32>
    %c0_10 = arith.constant 0 : index
    %c0_11 = arith.constant 0 : index
    %11 = vector.load %arg1[%c0_10, %c0_11] : memref<256x1xi32, #tpu.memory_space<vmem>>, vector<256x1xi32>
    %c16_i32 = arith.constant 16 : i32
    %12 = vector.broadcast %c16_i32 : i32 to vector<256x1xi32>
    %13 = arith.muli %11, %12 : vector<256x1xi32>
    %c0_12 = arith.constant 0 : index
    %c0_13 = arith.constant 0 : index
    %14 = vector.load %arg0[%c0_12, %c0_13] : memref<256x1xi32, #tpu.memory_space<vmem>>, vector<256x1xi32>
    %15 = arith.addi %13, %14 : vector<256x1xi32>
    %16 = tpu.iota {dimensions = array<i32: 1>} : vector<256x48xi32>
    %17 = vector.broadcast %15 : vector<256x1xi32> to vector<256x48xi32>
    %18 = arith.cmpi eq, %16, %17 : vector<256x48xi32>
    %19 = arith.extui %18 : vector<256x48xi1> to vector<256x48xi32>
    %20 = arith.sitofp %19 : vector<256x48xi32> to vector<256x48xf32>
    %cst_14 = arith.constant dense<0.000000e+00> : vector<256x128xf32>
    %21 = tpu.matmul %20, %10, %cst_14 {dimension_numbers = #tpu.dot_dimension_numbers<[1], [0], [0], [1], [0, 0, 1, 1], [], []>} : vector<256x48xf32>, vector<48x128xf32>, vector<256x128xf32> -> vector<256x128xf32>
    %22 = vector.extract_strided_slice %21 {offsets = [0, 64], sizes = [256, 8], strides = [1, 1]} : vector<256x128xf32> to vector<256x8xf32>
    %cst_15 = arith.constant 0.000000e+00 : f32
    %23 = vector.broadcast %cst_15 : f32 to vector<256x8xf32>
    %24 = arith.cmpf ogt, %22, %23 : vector<256x8xf32>
    %cst_16 = arith.constant 2.000000e-01 : f32
    %25 = vector.broadcast %cst_16 : f32 to vector<256x8xf32>
    %26 = arith.mulf %25, %22 : vector<256x8xf32>
    %27 = arith.select %24, %22, %26 : vector<256x8xi1>, vector<256x8xf32>
    %28 = arith.negf %27 : vector<256x8xf32>
    %29 = math.exp %28 : vector<256x8xf32>
    %cst_17 = arith.constant 1.000000e+00 : f32
    %30 = vector.broadcast %cst_17 : f32 to vector<256x8xf32>
    %31 = arith.addf %30, %29 : vector<256x8xf32>
    %32 = arith.divf %30, %31 : vector<256x8xf32>
    %c0_18 = arith.constant 0 : index
    %c0_19 = arith.constant 0 : index
    %33 = vector.load %arg3[%c0_18, %c0_19] : memref<256x1xf32, #tpu.memory_space<vmem>>, vector<256x1xf32>
    %34 = vector.broadcast %33 : vector<256x1xf32> to vector<256x8xf32>
    %35 = arith.mulf %32, %34 : vector<256x8xf32>
    %c0_20 = arith.constant 0 : index
    %c0_21 = arith.constant 0 : index
    %36 = vector.load %arg6[%c0_20, %c0_21] : memref<8x128xf32, #tpu.memory_space<vmem>>, vector<8x128xf32>
    %cst_22 = arith.constant dense<0.000000e+00> : vector<256x128xf32>
    %37 = tpu.matmul %35, %36, %cst_22 {dimension_numbers = #tpu.dot_dimension_numbers<[1], [0], [0], [1], [0, 0, 1, 1], [], []>} : vector<256x8xf32>, vector<8x128xf32>, vector<256x128xf32> -> vector<256x128xf32>
    %38 = arith.mulf %21, %37 : vector<256x128xf32>
    %39 = tpu.iota {dimensions = array<i32: 0>} : vector<16x256xi32>
    %c0_23 = arith.constant 0 : index
    %c0_24 = arith.constant 0 : index
    %40 = vector.load %arg2[%c0_23, %c0_24] : memref<1x256xi32, #tpu.memory_space<vmem>>, vector<1x256xi32>
    %41 = vector.broadcast %40 : vector<1x256xi32> to vector<16x256xi32>
    %42 = arith.cmpi eq, %39, %41 : vector<16x256xi32>
    %43 = arith.extui %42 : vector<16x256xi1> to vector<16x256xi32>
    %44 = arith.sitofp %43 : vector<16x256xi32> to vector<16x256xf32>
    %45 = tpu.concatenate %44, %0 in 1 : vector<16x256xf32>, vector<16x128xf32> -> vector<16x384xf32>
    %c0_25 = arith.constant 0 : index
    %c0_26 = arith.constant 0 : index
    %46 = vector.load %arg7[%c0_25, %c0_26] : memref<128x128xf32, #tpu.memory_space<vmem>>, vector<128x128xf32>
    %47 = tpu.concatenate %38, %46 in 0 : vector<256x128xf32>, vector<128x128xf32> -> vector<384x128xf32>
    %cst_27 = arith.constant dense<0.000000e+00> : vector<16x128xf32>
    %48 = tpu.matmul %45, %47, %cst_27 {dimension_numbers = #tpu.dot_dimension_numbers<[1], [0], [0], [1], [0, 0, 1, 1], [], []>} : vector<16x384xf32>, vector<384x128xf32>, vector<16x128xf32> -> vector<16x128xf32>
    %c0_28 = arith.constant 0 : index
    %c0_29 = arith.constant 0 : index
    %49 = vector.load %arg8[%c0_28, %c0_29] : memref<1x128xf32, #tpu.memory_space<vmem>>, vector<1x128xf32>
    %50 = vector.broadcast %49 : vector<1x128xf32> to vector<16x128xf32>
    %51 = arith.addf %48, %50 : vector<16x128xf32>
    %cst_30 = arith.constant 0.000000e+00 : f32
    %52 = vector.broadcast %cst_30 : f32 to vector<16x128xf32>
    %53 = arith.cmpf ogt, %51, %52 : vector<16x128xf32>
    %cst_31 = arith.constant 0.000000e+00 : f32
    %54 = vector.broadcast %cst_31 : f32 to vector<16x128xf32>
    %55 = arith.minimumf %51, %54 : vector<16x128xf32>
    %56 = math.exp %55 : vector<16x128xf32>
    %cst_32 = arith.constant 1.000000e+00 : f32
    %57 = vector.broadcast %cst_32 : f32 to vector<16x128xf32>
    %58 = arith.subf %56, %57 : vector<16x128xf32>
    %59 = arith.select %53, %51, %58 : vector<16x128xi1>, vector<16x128xf32>
    %c0_33 = arith.constant 0 : index
    %c0_34 = arith.constant 0 : index
    %60 = vector.load %arg9[%c0_33, %c0_34] : memref<16x128xf32, #tpu.memory_space<vmem>>, vector<16x128xf32>
    tpu.vector_store %arg9[%c0_33, %c0_34], %59 {strides = array<i32>} : memref<16x128xf32, #tpu.memory_space<vmem>>, vector<16x128xf32>,
    return
  }
}

</mosaic_0001>

<llo_original>
// kernel: hetsann_forward.1
$region0: #{hetsann_forward.1}
  #allocation0 [shape = 'u32[]', space=smem, size = 0x4, offset = 0x4, fixed_abs, tag = 'smem constant byte address 0x4 - core index']
  #allocation1 [shape = 'u32[144,128]{1,0:T(1,128)}', space=vmem, size = 0x12000, scoped, tag = 'internal scratch']
  %s0 = inlined_call_operand.vmem [shape: s32[256,1], index: 0, kind: input, shape index: {}]
  %s1 = inlined_call_operand.vmem [shape: s32[256,1], index: 1, kind: input, shape index: {}]
  %s2 = inlined_call_operand.vmem [shape: s32[1,256], index: 2, kind: input, shape index: {}]
  %s3 = inlined_call_operand.vmem [shape: f32[256,1], index: 3, kind: input, shape index: {}]
  %s4 = inlined_call_operand.vmem [shape: f32[16,128], index: 4, kind: input, shape index: {}]
  %s5 = inlined_call_operand.vmem [shape: f32[3,128,128], index: 5, kind: input, shape index: {}]
  %s6 = inlined_call_operand.vmem [shape: f32[8,128], index: 6, kind: input, shape index: {}]
  %s7 = inlined_call_operand.vmem [shape: f32[128,128], index: 7, kind: input, shape index: {}]
  %s8 = inlined_call_operand.vmem [shape: f32[1,128], index: 8, kind: input, shape index: {}]
  %s9 = inlined_call_operand.hbm [shape: f32[16,128], index: 9, kind: output, shape index: {}]
  %s10 = sld [smem:[#allocation0]]
  $region46: #{hetsann_forward.1} parent=0
    _
  %s12 = ssub.s32 1, %s10
  %s13 = scalar_select 0, %s12, %s10
  $region1: #{hetsann_forward.1} parent=0
    #allocation2 [shape = 'u8[8192]{0}', space=vmem, size = 0x2000, scoped, tag = 'output window, operand 0, single buffered']
    #allocation3 [shape = 's32[1]{0}', space=sflag, size = 0x4, scoped, tag = 'scoped memory for hetsann_forward.1']
    %14 = vsyncpa [#allocation3], 0
    // Predicated region
    $region2: #{hetsann_forward.1} parent=1 // pred_check
      _
    $region3: #{hetsann_forward.1} parent=1 // pred_check_branch
      %16 = sbr.rel (0) target = $region5
    $region4: #{hetsann_forward.1} parent=1 // pred_region
      _
    $region5: #{hetsann_forward.1} parent=1 // pred_fallthru
      _
    // Predicated region
    $region6: #{hetsann_forward.1} parent=1 // pred_check
      _
    $region7: #{hetsann_forward.1} parent=1 // pred_check_branch
      %18 = sbr.rel (0) target = $region9
    $region8: #{hetsann_forward.1} parent=1 // pred_region
      _
    $region9: #{hetsann_forward.1} parent=1 // pred_fallthru
      _
    // Predicated region
    $region10: #{hetsann_forward.1} parent=1 // pred_check
      _
    $region11: #{hetsann_forward.1} parent=1 // pred_check_branch
      %20 = sbr.rel (0) target = $region13
    $region12: #{hetsann_forward.1} parent=1 // pred_region
      _
    $region13: #{hetsann_forward.1} parent=1 // pred_fallthru
      _
    // Predicated region
    $region14: #{hetsann_forward.1} parent=1 // pred_check
      _
    $region15: #{hetsann_forward.1} parent=1 // pred_check_branch
      %22 = sbr.rel (0) target = $region17
    $region16: #{hetsann_forward.1} parent=1 // pred_region
      _
    $region17: #{hetsann_forward.1} parent=1 // pred_fallthru
      _
    // Predicated region
    $region18: #{hetsann_forward.1} parent=1 // pred_check
      _
    $region19: #{hetsann_forward.1} parent=1 // pred_check_branch
      %24 = sbr.rel (0) target = $region21
    $region20: #{hetsann_forward.1} parent=1 // pred_region
      _
    $region21: #{hetsann_forward.1} parent=1 // pred_fallthru
      _
    // Predicated region
    $region22: #{hetsann_forward.1} parent=1 // pred_check
      _
    $region23: #{hetsann_forward.1} parent=1 // pred_check_branch
      %26 = sbr.rel (0) target = $region25
    $region24: #{hetsann_forward.1} parent=1 // pred_region
      _
    $region25: #{hetsann_forward.1} parent=1 // pred_fallthru
      _
    // Predicated region
    $region26: #{hetsann_forward.1} parent=1 // pred_check
      _
    $region27: #{hetsann_forward.1} parent=1 // pred_check_branch
      %28 = sbr.rel (0) target = $region29
    $region28: #{hetsann_forward.1} parent=1 // pred_region
      _
    $region29: #{hetsann_forward.1} parent=1 // pred_fallthru
      _
    // Predicated region
    $region30: #{hetsann_forward.1} parent=1 // pred_check
      _
    $region31: #{hetsann_forward.1} parent=1 // pred_check_branch
      %30 = sbr.rel (0) target = $region33
    $region32: #{hetsann_forward.1} parent=1 // pred_region
      _
    $region33: #{hetsann_forward.1} parent=1 // pred_fallthru
      _
    // Predicated region
    $region34: #{hetsann_forward.1} parent=1 // pred_check
      _
    $region35: #{hetsann_forward.1} parent=1 // pred_check_branch
      %32 = sbr.rel (0) target = $region37
    $region36: #{hetsann_forward.1} parent=1 // pred_region
      _
    $region37: #{hetsann_forward.1} parent=1 // pred_fallthru
      _
    %v33 = vld [vmem:[%s4] sm:$0xff]
    %v34 = vld [vmem:[%s4 + $0x8] sm:$0xff]
    %v35 = vld [vmem:[%s5] sm:$0xff]
    %v36 = vld [vmem:[%s5 + $0x8] sm:$0xff]
    %v37 = vld [vmem:[%s5 + $0x10] sm:$0xff]
    %v38 = vld [vmem:[%s5 + $0x18] sm:$0xff]
    %v39 = vld [vmem:[%s5 + $0x20] sm:$0xff]
    %v40 = vld [vmem:[%s5 + $0x28] sm:$0xff]
    %v41 = vld [vmem:[%s5 + $0x30] sm:$0xff]
    %v42 = vld [vmem:[%s5 + $0x38] sm:$0xff]
    %v43 = vld [vmem:[%s5 + $0x40] sm:$0xff]
    %v44 = vld [vmem:[%s5 + $0x48] sm:$0xff]
    %v45 = vld [vmem:[%s5 + $0x50] sm:$0xff]
    %v46 = vld [vmem:[%s5 + $0x58] sm:$0xff]
    %v47 = vld [vmem:[%s5 + $0x60] sm:$0xff]
    %v48 = vld [vmem:[%s5 + $0x68] sm:$0xff]
    %v49 = vld [vmem:[%s5 + $0x70] sm:$0xff]
    %v50 = vld [vmem:[%s5 + $0x78] sm:$0xff]
    %51 = vmatprep.subr.mxu0 0.0
    %52 = vmatpush1.msra.mxu0 %v35
    %53 = vmatprep.subr.mxu0 0.0
    %54 = vmatpush1.msra.mxu0 %v36
    %55 = vmatprep.subr.mxu0 0.0
    %56 = vmatpush1.msra.mxu0 %v37
    %57 = vmatprep.subr.mxu0 0.0
    %58 = vmatpush1.msra.mxu0 %v38
    %59 = vmatprep.subr.mxu0 0.0
    %60 = vmatpush1.msra.mxu0 %v39
    %61 = vmatprep.subr.mxu0 0.0
    %62 = vmatpush1.msra.mxu0 %v40
    %63 = vmatprep.subr.mxu0 0.0
    %64 = vmatpush1.msra.mxu0 %v41
    %65 = vmatprep.subr.mxu0 0.0
    %66 = vmatpush1.msra.mxu0 %v42
    %67 = vmatprep.subr.mxu0 0.0
    %68 = vmatpush1.msra.mxu0 %v43
    %69 = vmatprep.subr.mxu0 0.0
    %70 = vmatpush1.msra.mxu0 %v44
    %71 = vmatprep.subr.mxu0 0.0
    %72 = vmatpush1.msra.mxu0 %v45
    %73 = vmatprep.subr.mxu0 0.0
    %74 = vmatpush1.msra.mxu0 %v46
    %75 = vmatprep.subr.mxu0 0.0
    %76 = vmatpush1.msra.mxu0 %v47
    %77 = vmatprep.subr.mxu0 0.0
    %78 = vmatpush1.msra.mxu0 %v48
    %79 = vmatprep.subr.mxu0 0.0
    %80 = vmatpush1.msra.mxu0 %v49
    %81 = vmatprep.subr.mxu0 0.0
    %82 = vmatpush1.msra.mxu0 %v50
    %83 = vmatprep.subr.mxu0 0.0
    %84 = vmatpush1.msra.mxu0 0.0
    %85 = vmatprep.subr.mxu0 0.0
    %86 = vmatpush1.msra.mxu0 0.0
    %87 = vmatprep.subr.mxu0 0.0
    %88 = vmatpush1.msra.mxu0 0.0
    %89 = vmatprep.subr.mxu0 0.0
    %90 = vmatpush1.msra.mxu0 0.0
    %91 = vmatprep.subr.mxu0 0.0
    %92 = vmatpush1.msra.mxu0 0.0
    %93 = vmatprep.subr.mxu0 0.0
    %94 = vmatpush1.msra.mxu0 0.0
    %95 = vmatprep.subr.mxu0 0.0
    %96 = vmatpush1.msra.mxu0 0.0
    %97 = vmatprep.subr.mxu0 0.0
    %98 = vmatpush1.msra.mxu0 0.0
    %99 = vmatprep.subr.mxu0 0.0
    %100 = vmatpush1.msra.mxu0 0.0
    %101 = vmatprep.subr.mxu0 0.0
    %102 = vmatpush1.msra.mxu0 0.0
    %103 = vmatprep.subr.mxu0 0.0
    %104 = vmatpush1.msra.mxu0 0.0
    %105 = vmatprep.subr.mxu0 0.0
    %106 = vmatpush1.msra.mxu0 0.0
    %107 = vmatprep.subr.mxu0 0.0
    %108 = vmatpush1.msra.mxu0 0.0
    %109 = vmatprep.subr.mxu0 0.0
    %110 = vmatpush1.msra.mxu0 0.0
    %111 = vmatprep.subr.mxu0 0.0
    %112 = vmatpush1.msra.mxu0 0.0
    %113 = vmatprep.subr.mxu0 0.0
    %114 = vmatpush1.msra.mxu0 0.0
    %115 = vmatprep.mubr.f32.mxu0 0.0
    %116 = vmatmul.mubr.f32.gmra.mrb[0].mxu0 %v33
    %v117 = vpop.f32.mrb[0].mxu0
    %v118 = vadd.f32 0.0, %v117
    %v119 = vpop.f32.mrb[0].mxu0
    %120 = vmatprep.mubr.f32.mxu0 0.0
    %121 = vmatmul.mubr.f32.gmra.mrb[0].mxu0 %v34
    %v122 = vpop.f32.mrb[0].mxu0
    %v123 = vadd.f32 0.0, %v122
    %v124 = vpop.f32.mrb[0].mxu0
    %125 = vdwg.mxu0
    %s126 = scalar_lea.vmem %s5, 128
    %v127 = vld [vmem:[%s126] sm:$0xff]
    %v128 = vld [vmem:[%s126 + $0x8] sm:$0xff]
    %v129 = vld [vmem:[%s126 + $0x10] sm:$0xff]
    %v130 = vld [vmem:[%s126 + $0x18] sm:$0xff]
    %v131 = vld [vmem:[%s126 + $0x20] sm:$0xff]
    %v132 = vld [vmem:[%s126 + $0x28] sm:$0xff]
    %v133 = vld [vmem:[%s126 + $0x30] sm:$0xff]
    %v134 = vld [vmem:[%s126 + $0x38] sm:$0xff]
    %v135 = vld [vmem:[%s126 + $0x40] sm:$0xff]
    %v136 = vld [vmem:[%s126 + $0x48] sm:$0xff]
    %v137 = vld [vmem:[%s126 + $0x50] sm:$0xff]
    %v138 = vld [vmem:[%s126 + $0x58] sm:$0xff]
    %v139 = vld [vmem:[%s126 + $0x60] sm:$0xff]
    %v140 = vld [vmem:[%s126 + $0x68] sm:$0xff]
    %v141 = vld [vmem:[%s126 + $0x70] sm:$0xff]
    %v142 = vld [vmem:[%s126 + $0x78] sm:$0xff]
    %143 = vmatprep.subr.mxu0 0.0
    %144 = vmatpush1.msra.mxu0 %v127
    %145 = vmatprep.subr.mxu0 0.0
    %146 = vmatpush1.msra.mxu0 %v128
    %147 = vmatprep.subr.mxu0 0.0
    %148 = vmatpush1.msra.mxu0 %v129
    %149 = vmatprep.subr.mxu0 0.0
    %150 = vmatpush1.msra.mxu0 %v130
    %151 = vmatprep.subr.mxu0 0.0
    %152 = vmatpush1.msra.mxu0 %v131
    %153 = vmatprep.subr.mxu0 0.0
    %154 = vmatpush1.msra.mxu0 %v132
    %155 = vmatprep.subr.mxu0 0.0
    %156 = vmatpush1.msra.mxu0 %v133
    %157 = vmatprep.subr.mxu0 0.0
    %158 = vmatpush1.msra.mxu0 %v134
    %159 = vmatprep.subr.mxu0 0.0
    %160 = vmatpush1.msra.mxu0 %v135
    %161 = vmatprep.subr.mxu0 0.0
    %162 = vmatpush1.msra.mxu0 %v136
    %163 = vmatprep.subr.mxu0 0.0
    %164 = vmatpush1.msra.mxu0 %v137
    %165 = vmatprep.subr.mxu0 0.0
    %166 = vmatpush1.msra.mxu0 %v138
    %167 = vmatprep.subr.mxu0 0.0
    %168 = vmatpush1.msra.mxu0 %v139
    %169 = vmatprep.subr.mxu0 0.0
    %170 = vmatpush1.msra.mxu0 %v140
    %171 = vmatprep.subr.mxu0 0.0
    %172 = vmatpush1.msra.mxu0 %v141
    %173 = vmatprep.subr.mxu0 0.0
    %174 = vmatpush1.msra.mxu0 %v142
    %175 = vmatprep.subr.mxu0 0.0
    %176 = vmatpush1.msra.mxu0 0.0
    %177 = vmatprep.subr.mxu0 0.0
    %178 = vmatpush1.msra.mxu0 0.0
    %179 = vmatprep.subr.mxu0 0.0
    %180 = vmatpush1.msra.mxu0 0.0
    %181 = vmatprep.subr.mxu0 0.0
    %182 = vmatpush1.msra.mxu0 0.0
    %183 = vmatprep.subr.mxu0 0.0
    %184 = vmatpush1.msra.mxu0 0.0
    %185 = vmatprep.subr.mxu0 0.0
    %186 = vmatpush1.msra.mxu0 0.0
    %187 = vmatprep.subr.mxu0 0.0
    %188 = vmatpush1.msra.mxu0 0.0
    %189 = vmatprep.subr.mxu0 0.0
    %190 = vmatpush1.msra.mxu0 0.0
    %191 = vmatprep.subr.mxu0 0.0
    %192 = vmatpush1.msra.mxu0 0.0
    %193 = vmatprep.subr.mxu0 0.0
    %194 = vmatpush1.msra.mxu0 0.0
    %195 = vmatprep.subr.mxu0 0.0
    %196 = vmatpush1.msra.mxu0 0.0
    %197 = vmatprep.subr.mxu0 0.0
    %198 = vmatpush1.msra.mxu0 0.0
    %199 = vmatprep.subr.mxu0 0.0
    %200 = vmatpush1.msra.mxu0 0.0
    %201 = vmatprep.subr.mxu0 0.0
    %202 = vmatpush1.msra.mxu0 0.0
    %203 = vmatprep.subr.mxu0 0.0
    %204 = vmatpush1.msra.mxu0 0.0
    %205 = vmatprep.subr.mxu0 0.0
    %206 = vmatpush1.msra.mxu0 0.0
    %207 = vmatprep.mubr.f32.mxu0 0.0
    %208 = vmatmul.mubr.f32.gmra.mrb[0].mxu0 %v33
    %v209 = vpop.f32.mrb[0].mxu0
    %v210 = vadd.f32 0.0, %v209
    %v211 = vpop.f32.mrb[0].mxu0
    %212 = vmatprep.mubr.f32.mxu0 0.0
    %213 = vmatmul.mubr.f32.gmra.mrb[0].mxu0 %v34
    %v214 = vpop.f32.mrb[0].mxu0
    %v215 = vadd.f32 0.0, %v214
    %v216 = vpop.f32.mrb[0].mxu0
    %217 = vdwg.mxu0
    %s218 = scalar_lea.vmem %s5, 256
    %v219 = vld [vmem:[%s218] sm:$0xff]
    %v220 = vld [vmem:[%s218 + $0x8] sm:$0xff]
    %v221 = vld [vmem:[%s218 + $0x10] sm:$0xff]
    %v222 = vld [vmem:[%s218 + $0x18] sm:$0xff]
    %v223 = vld [vmem:[%s218 + $0x20] sm:$0xff]
    %v224 = vld [vmem:[%s218 + $0x28] sm:$0xff]
    %v225 = vld [vmem:[%s218 + $0x30] sm:$0xff]
    %v226 = vld [vmem:[%s218 + $0x38] sm:$0xff]
    %v227 = vld [vmem:[%s218 + $0x40] sm:$0xff]
    %v228 = vld [vmem:[%s218 + $0x48] sm:$0xff]
    %v229 = vld [vmem:[%s218 + $0x50] sm:$0xff]
    %v230 = vld [vmem:[%s218 + $0x58] sm:$0xff]
    %v231 = vld [vmem:[%s218 + $0x60] sm:$0xff]
    %v232 = vld [vmem:[%s218 + $0x68] sm:$0xff]
    %v233 = vld [vmem:[%s218 + $0x70] sm:$0xff]
    %v234 = vld [vmem:[%s218 + $0x78] sm:$0xff]
    %235 = vmatprep.subr.mxu0 0.0
    %236 = vmatpush1.msra.mxu0 %v219
    %237 = vmatprep.subr.mxu0 0.0
    %238 = vmatpush1.msra.mxu0 %v220
    %239 = vmatprep.subr.mxu0 0.0
    %240 = vmatpush1.msra.mxu0 %v221
    %241 = vmatprep.subr.mxu0 0.0
    %242 = vmatpush1.msra.mxu0 %v222
    %243 = vmatprep.subr.mxu0 0.0
    %244 = vmatpush1.msra.mxu0 %v223
    %245 = vmatprep.subr.mxu0 0.0
    %246 = vmatpush1.msra.mxu0 %v224
    %247 = vmatprep.subr.mxu0 0.0
    %248 = vmatpush1.msra.mxu0 %v225
    %249 = vmatprep.subr.mxu0 0.0
    %250 = vmatpush1.msra.mxu0 %v226
    %251 = vmatprep.subr.mxu0 0.0
    %252 = vmatpush1.msra.mxu0 %v227
    %253 = vmatprep.subr.mxu0 0.0
    %254 = vmatpush1.msra.mxu0 %v228
    %255 = vmatprep.subr.mxu0 0.0
    %256 = vmatpush1.msra.mxu0 %v229
    %257 = vmatprep.subr.mxu0 0.0
    %258 = vmatpush1.msra.mxu0 %v230
    %259 = vmatprep.subr.mxu0 0.0
    %260 = vmatpush1.msra.mxu0 %v231
    %261 = vmatprep.subr.mxu0 0.0
    %262 = vmatpush1.msra.mxu0 %v232
    %263 = vmatprep.subr.mxu0 0.0
    %264 = vmatpush1.msra.mxu0 %v233
    %265 = vmatprep.subr.mxu0 0.0
    %266 = vmatpush1.msra.mxu0 %v234
    %267 = vmatprep.subr.mxu0 0.0
    %268 = vmatpush1.msra.mxu0 0.0
    %269 = vmatprep.subr.mxu0 0.0
    %270 = vmatpush1.msra.mxu0 0.0
    %271 = vmatprep.subr.mxu0 0.0
    %272 = vmatpush1.msra.mxu0 0.0
    %273 = vmatprep.subr.mxu0 0.0
    %274 = vmatpush1.msra.mxu0 0.0
    %275 = vmatprep.subr.mxu0 0.0
    %276 = vmatpush1.msra.mxu0 0.0
    %277 = vmatprep.subr.mxu0 0.0
    %278 = vmatpush1.msra.mxu0 0.0
    %279 = vmatprep.subr.mxu0 0.0
    %280 = vmatpush1.msra.mxu0 0.0
    %281 = vmatprep.subr.mxu0 0.0
    %282 = vmatpush1.msra.mxu0 0.0
    %283 = vmatprep.subr.mxu0 0.0
    %284 = vmatpush1.msra.mxu0 0.0
    %285 = vmatprep.subr.mxu0 0.0
    %286 = vmatpush1.msra.mxu0 0.0
    %287 = vmatprep.subr.mxu0 0.0
    %288 = vmatpush1.msra.mxu0 0.0
    %289 = vmatprep.subr.mxu0 0.0
    %290 = vmatpush1.msra.mxu0 0.0
    %291 = vmatprep.subr.mxu0 0.0
    %292 = vmatpush1.msra.mxu0 0.0
    %293 = vmatprep.subr.mxu0 0.0
    %294 = vmatpush1.msra.mxu0 0.0
    %295 = vmatprep.subr.mxu0 0.0
    %296 = vmatpush1.msra.mxu0 0.0
    %297 = vmatprep.subr.mxu0 0.0
    %298 = vmatpush1.msra.mxu0 0.0
    %299 = vmatprep.mubr.f32.mxu0 0.0
    %300 = vmatmul.mubr.f32.gmra.mrb[0].mxu0 %v33
    %v301 = vpop.f32.mrb[0].mxu0
    %v302 = vadd.f32 0.0, %v301
    %v303 = vpop.f32.mrb[0].mxu0
    %304 = vmatprep.mubr.f32.mxu0 0.0
    %305 = vmatmul.mubr.f32.gmra.mrb[0].mxu0 %v34
    %v306 = vpop.f32.mrb[0].mxu0
    %v307 = vadd.f32 0.0, %v306
    %v308 = vpop.f32.mrb[0].mxu0
    %309 = vdwg.mxu0
    %v310 = vld [vmem:[%s1] sm:$0xff]
    %v311 = vld [vmem:[%s1 + $0x8] sm:$0xff]
    %v312 = vld [vmem:[%s1 + $0x10] sm:$0xff]
    %v313 = vld [vmem:[%s1 + $0x18] sm:$0xff]
    %v314 = vld [vmem:[%s1 + $0x20] sm:$0xff]
    %v315 = vld [vmem:[%s1 + $0x28] sm:$0xff]
    %v316 = vld [vmem:[%s1 + $0x30] sm:$0xff]
    %v317 = vld [vmem:[%s1 + $0x38] sm:$0xff]
    %v318 = vld [vmem:[%s1 + $0x40] sm:$0xff]
    %v319 = vld [vmem:[%s1 + $0x48] sm:$0xff]
    %v320 = vld [vmem:[%s1 + $0x50] sm:$0xff]
    %v321 = vld [vmem:[%s1 + $0x58] sm:$0xff]
    %v322 = vld [vmem:[%s1 + $0x60] sm:$0xff]
    %v323 = vld [vmem:[%s1 + $0x68] sm:$0xff]
    %v324 = vld [vmem:[%s1 + $0x70] sm:$0xff]
    %v325 = vld [vmem:[%s1 + $0x78] sm:$0xff]
    %v326 = vld [vmem:[%s1 + $0x80] sm:$0xff]
    %v327 = vld [vmem:[%s1 + $0x88] sm:$0xff]
    %v328 = vld [vmem:[%s1 + $0x90] sm:$0xff]
    %v329 = vld [vmem:[%s1 + $0x98] sm:$0xff]
    %v330 = vld [vmem:[%s1 + $0xa0] sm:$0xff]
    %v331 = vld [vmem:[%s1 + $0xa8] sm:$0xff]
    %v332 = vld [vmem:[%s1 + $0xb0] sm:$0xff]
    %v333 = vld [vmem:[%s1 + $0xb8] sm:$0xff]
    %v334 = vld [vmem:[%s1 + $0xc0] sm:$0xff]
    %v335 = vld [vmem:[%s1 + $0xc8] sm:$0xff]
    %v336 = vld [vmem:[%s1 + $0xd0] sm:$0xff]
    %v337 = vld [vmem:[%s1 + $0xd8] sm:$0xff]
    %v338 = vld [vmem:[%s1 + $0xe0] sm:$0xff]
    %v339 = vld [vmem:[%s1 + $0xe8] sm:$0xff]
    %v340 = vld [vmem:[%s1 + $0xf0] sm:$0xff]
    %v341 = vld [vmem:[%s1 + $0xf8] sm:$0xff]
    %v342 = vmul.u32 %v310, 16
    %v343 = vmul.u32 %v311, 16
    %v344 = vmul.u32 %v312, 16
    %v345 = vmul.u32 %v313, 16
    %v346 = vmul.u32 %v314, 16
    %v347 = vmul.u32 %v315, 16
    %v348 = vmul.u32 %v316, 16
    %v349 = vmul.u32 %v317, 16
    %v350 = vmul.u32 %v318, 16
    %v351 = vmul.u32 %v319, 16
    %v352 = vmul.u32 %v320, 16
    %v353 = vmul.u32 %v321, 16
    %v354 = vmul.u32 %v322, 16
    %v355 = vmul.u32 %v323, 16
    %v356 = vmul.u32 %v324, 16
    %v357 = vmul.u32 %v325, 16
    %v358 = vmul.u32 %v326, 16
    %v359 = vmul.u32 %v327, 16
    %v360 = vmul.u32 %v328, 16
    %v361 = vmul.u32 %v329, 16
    %v362 = vmul.u32 %v330, 16
    %v363 = vmul.u32 %v331, 16
    %v364 = vmul.u32 %v332, 16
    %v365 = vmul.u32 %v333, 16
    %v366 = vmul.u32 %v334, 16
    %v367 = vmul.u32 %v335, 16
    %v368 = vmul.u32 %v336, 16
    %v369 = vmul.u32 %v337, 16
    %v370 = vmul.u32 %v338, 16
    %v371 = vmul.u32 %v339, 16
    %v372 = vmul.u32 %v340, 16
    %v373 = vmul.u32 %v341, 16
    %v374 = vld [vmem:[%s0] sm:$0xff]
    %v375 = vld [vmem:[%s0 + $0x8] sm:$0xff]
    %v376 = vld [vmem:[%s0 + $0x10] sm:$0xff]
    %v377 = vld [vmem:[%s0 + $0x18] sm:$0xff]
    %v378 = vld [vmem:[%s0 + $0x20] sm:$0xff]
    %v379 = vld [vmem:[%s0 + $0x28] sm:$0xff]
    %v380 = vld [vmem:[%s0 + $0x30] sm:$0xff]
    %v381 = vld [vmem:[%s0 + $0x38] sm:$0xff]
    %v382 = vld [vmem:[%s0 + $0x40] sm:$0xff]
    %v383 = vld [vmem:[%s0 + $0x48] sm:$0xff]
    %v384 = vld [vmem:[%s0 + $0x50] sm:$0xff]
    %v385 = vld [vmem:[%s0 + $0x58] sm:$0xff]
    %v386 = vld [vmem:[%s0 + $0x60] sm:$0xff]
    %v387 = vld [vmem:[%s0 + $0x68] sm:$0xff]
    %v388 = vld [vmem:[%s0 + $0x70] sm:$0xff]
    %v389 = vld [vmem:[%s0 + $0x78] sm:$0xff]
    %v390 = vld [vmem:[%s0 + $0x80] sm:$0xff]
    %v391 = vld [vmem:[%s0 + $0x88] sm:$0xff]
    %v392 = vld [vmem:[%s0 + $0x90] sm:$0xff]
    %v393 = vld [vmem:[%s0 + $0x98] sm:$0xff]
    %v394 = vld [vmem:[%s0 + $0xa0] sm:$0xff]
    %v395 = vld [vmem:[%s0 + $0xa8] sm:$0xff]
    %v396 = vld [vmem:[%s0 + $0xb0] sm:$0xff]
    %v397 = vld [vmem:[%s0 + $0xb8] sm:$0xff]
    %v398 = vld [vmem:[%s0 + $0xc0] sm:$0xff]
    %v399 = vld [vmem:[%s0 + $0xc8] sm:$0xff]
    %v400 = vld [vmem:[%s0 + $0xd0] sm:$0xff]
    %v401 = vld [vmem:[%s0 + $0xd8] sm:$0xff]
    %v402 = vld [vmem:[%s0 + $0xe0] sm:$0xff]
    %v403 = vld [vmem:[%s0 + $0xe8] sm:$0xff]
    %v404 = vld [vmem:[%s0 + $0xf0] sm:$0xff]
    %v405 = vld [vmem:[%s0 + $0xf8] sm:$0xff]
    %v406 = vadd.s32 %v342, %v374
    %v407 = vadd.s32 %v343, %v375
    %v408 = vadd.s32 %v344, %v376
    %v409 = vadd.s32 %v345, %v377
    %v410 = vadd.s32 %v346, %v378
    %v411 = vadd.s32 %v347, %v379
    %v412 = vadd.s32 %v348, %v380
    %v413 = vadd.s32 %v349, %v381
    %v414 = vadd.s32 %v350, %v382
    %v415 = vadd.s32 %v351, %v383
    %v416 = vadd.s32 %v352, %v384
    %v417 = vadd.s32 %v353, %v385
    %v418 = vadd.s32 %v354, %v386
    %v419 = vadd.s32 %v355, %v387
    %v420 = vadd.s32 %v356, %v388
    %v421 = vadd.s32 %v357, %v389
    %v422 = vadd.s32 %v358, %v390
    %v423 = vadd.s32 %v359, %v391
    %v424 = vadd.s32 %v360, %v392
    %v425 = vadd.s32 %v361, %v393
    %v426 = vadd.s32 %v362, %v394
    %v427 = vadd.s32 %v363, %v395
    %v428 = vadd.s32 %v364, %v396
    %v429 = vadd.s32 %v365, %v397
    %v430 = vadd.s32 %v366, %v398
    %v431 = vadd.s32 %v367, %v399
    %v432 = vadd.s32 %v368, %v400
    %v433 = vadd.s32 %v369, %v401
    %v434 = vadd.s32 %v370, %v402
    %v435 = vadd.s32 %v371, %v403
    %v436 = vadd.s32 %v372, %v404
    %v437 = vadd.s32 %v373, %v405
    %v438 = vlaneseq
    %v439 = vand.u32 %v438, 127
    %440 = vset.pattern.permute.xlu0 0
    %441 = vperm.xlu0 %440, %v406
    %v442 = vpop.permute.xlu0 %441
    %443 = vset.pattern.permute.xlu0 0
    %444 = vperm.xlu0 %443, %v407
    %v445 = vpop.permute.xlu0 %444
    %446 = vset.pattern.permute.xlu0 0
    %447 = vperm.xlu0 %446, %v408
    %v448 = vpop.permute.xlu0 %447
    %449 = vset.pattern.permute.xlu0 0
    %450 = vperm.xlu0 %449, %v409
    %v451 = vpop.permute.xlu0 %450
    %452 = vset.pattern.permute.xlu0 0
    %453 = vperm.xlu0 %452, %v410
    %v454 = vpop.permute.xlu0 %453
    %455 = vset.pattern.permute.xlu0 0
    %456 = vperm.xlu0 %455, %v411
    %v457 = vpop.permute.xlu0 %456
    %458 = vset.pattern.permute.xlu0 0
    %459 = vperm.xlu0 %458, %v412
    %v460 = vpop.permute.xlu0 %459
    %461 = vset.pattern.permute.xlu0 0
    %462 = vperm.xlu0 %461, %v413
    %v463 = vpop.permute.xlu0 %462
    %464 = vset.pattern.permute.xlu0 0
    %465 = vperm.xlu0 %464, %v414
    %v466 = vpop.permute.xlu0 %465
    %467 = vset.pattern.permute.xlu0 0
    %468 = vperm.xlu0 %467, %v415
    %v469 = vpop.permute.xlu0 %468
    %470 = vset.pattern.permute.xlu0 0
    %471 = vperm.xlu0 %470, %v416
    %v472 = vpop.permute.xlu0 %471
    %473 = vset.pattern.permute.xlu0 0
    %474 = vperm.xlu0 %473, %v417
    %v475 = vpop.permute.xlu0 %474
    %476 = vset.pattern.permute.xlu0 0
    %477 = vperm.xlu0 %476, %v418
    %v478 = vpop.permute.xlu0 %477
    %479 = vset.pattern.permute.xlu0 0
    %480 = vperm.xlu0 %479, %v419
    %v481 = vpop.permute.xlu0 %480
    %482 = vset.pattern.permute.xlu0 0
    %483 = vperm.xlu0 %482, %v420
    %v484 = vpop.permute.xlu0 %483
    %485 = vset.pattern.permute.xlu0 0
    %486 = vperm.xlu0 %485, %v421
    %v487 = vpop.permute.xlu0 %486
    %488 = vset.pattern.permute.xlu0 0
    %489 = vperm.xlu0 %488, %v422
    %v490 = vpop.permute.xlu0 %489
    %491 = vset.pattern.permute.xlu0 0
    %492 = vperm.xlu0 %491, %v423
    %v493 = vpop.permute.xlu0 %492
    %494 = vset.pattern.permute.xlu0 0
    %495 = vperm.xlu0 %494, %v424
    %v496 = vpop.permute.xlu0 %495
    %497 = vset.pattern.permute.xlu0 0
    %498 = vperm.xlu0 %497, %v425
    %v499 = vpop.permute.xlu0 %498
    %500 = vset.pattern.permute.xlu0 0
    %501 = vperm.xlu0 %500, %v426
    %v502 = vpop.permute.xlu0 %501
    %503 = vset.pattern.permute.xlu0 0
    %504 = vperm.xlu0 %503, %v427
    %v505 = vpop.permute.xlu0 %504
    %506 = vset.pattern.permute.xlu0 0
    %507 = vperm.xlu0 %506, %v428
    %v508 = vpop.permute.xlu0 %507
    %509 = vset.pattern.permute.xlu0 0
    %510 = vperm.xlu0 %509, %v429
    %v511 = vpop.permute.xlu0 %510
    %512 = vset.pattern.permute.xlu0 0
    %513 = vperm.xlu0 %512, %v430
    %v514 = vpop.permute.xlu0 %513
    %515 = vset.pattern.permute.xlu0 0
    %516 = vperm.xlu0 %515, %v431
    %v517 = vpop.permute.xlu0 %516
    %518 = vset.pattern.permute.xlu0 0
    %519 = vperm.xlu0 %518, %v432
    %v520 = vpop.permute.xlu0 %519
    %521 = vset.pattern.permute.xlu0 0
    %522 = vperm.xlu0 %521, %v433
    %v523 = vpop.permute.xlu0 %522
    %524 = vset.pattern.permute.xlu0 0
    %525 = vperm.xlu0 %524, %v434
    %v526 = vpop.permute.xlu0 %525
    %527 = vset.pattern.permute.xlu0 0
    %528 = vperm.xlu0 %527, %v435
    %v529 = vpop.permute.xlu0 %528
    %530 = vset.pattern.permute.xlu0 0
    %531 = vperm.xlu0 %530, %v436
    %v532 = vpop.permute.xlu0 %531
    %533 = vset.pattern.permute.xlu0 0
    %534 = vperm.xlu0 %533, %v437
    %v535 = vpop.permute.xlu0 %534
    %vm536 = vcmp.eq.s32.totalorder %v439, %v442
    %vm537 = vcmp.eq.s32.totalorder %v439, %v445
    %vm538 = vcmp.eq.s32.totalorder %v439, %v448
    %vm539 = vcmp.eq.s32.totalorder %v439, %v451
    %vm540 = vcmp.eq.s32.totalorder %v439, %v454
    %vm541 = vcmp.eq.s32.totalorder %v439, %v457
    %vm542 = vcmp.eq.s32.totalorder %v439, %v460
    %vm543 = vcmp.eq.s32.totalorder %v439, %v463
    %vm544 = vcmp.eq.s32.totalorder %v439, %v466
    %vm545 = vcmp.eq.s32.totalorder %v439, %v469
    %vm546 = vcmp.eq.s32.totalorder %v439, %v472
    %vm547 = vcmp.eq.s32.totalorder %v439, %v475
    %vm548 = vcmp.eq.s32.totalorder %v439, %v478
    %vm549 = vcmp.eq.s32.totalorder %v439, %v481
    %vm550 = vcmp.eq.s32.totalorder %v439, %v484
    %vm551 = vcmp.eq.s32.totalorder %v439, %v487
    %vm552 = vcmp.eq.s32.totalorder %v439, %v490
    %vm553 = vcmp.eq.s32.totalorder %v439, %v493
    %vm554 = vcmp.eq.s32.totalorder %v439, %v496
    %vm555 = vcmp.eq.s32.totalorder %v439, %v499
    %vm556 = vcmp.eq.s32.totalorder %v439, %v502
    %vm557 = vcmp.eq.s32.totalorder %v439, %v505
    %vm558 = vcmp.eq.s32.totalorder %v439, %v508
    %vm559 = vcmp.eq.s32.totalorder %v439, %v511
    %vm560 = vcmp.eq.s32.totalorder %v439, %v514
    %vm561 = vcmp.eq.s32.totalorder %v439, %v517
    %vm562 = vcmp.eq.s32.totalorder %v439, %v520
    %vm563 = vcmp.eq.s32.totalorder %v439, %v523
    %vm564 = vcmp.eq.s32.totalorder %v439, %v526
    %vm565 = vcmp.eq.s32.totalorder %v439, %v529
    %vm566 = vcmp.eq.s32.totalorder %v439, %v532
    %vm567 = vcmp.eq.s32.totalorder %v439, %v535
    %v568 = vsel %vm536, 1, 0
    %v569 = vsel %vm537, 1, 0
    %v570 = vsel %vm538, 1, 0
    %v571 = vsel %vm539, 1, 0
    %v572 = vsel %vm540, 1, 0
    %v573 = vsel %vm541, 1, 0
    %v574 = vsel %vm542, 1, 0
    %v575 = vsel %vm543, 1, 0
    %v576 = vsel %vm544, 1, 0
    %v577 = vsel %vm545, 1, 0
    %v578 = vsel %vm546, 1, 0
    %v579 = vsel %vm547, 1, 0
    %v580 = vsel %vm548, 1, 0
    %v581 = vsel %vm549, 1, 0
    %v582 = vsel %vm550, 1, 0
    %v583 = vsel %vm551, 1, 0
    %v584 = vsel %vm552, 1, 0
    %v585 = vsel %vm553, 1, 0
    %v586 = vsel %vm554, 1, 0
    %v587 = vsel %vm555, 1, 0
    %v588 = vsel %vm556, 1, 0
    %v589 = vsel %vm557, 1, 0
    %v590 = vsel %vm558, 1, 0
    %v591 = vsel %vm559, 1, 0
    %v592 = vsel %vm560, 1, 0
    %v593 = vsel %vm561, 1, 0
    %v594 = vsel %vm562, 1, 0
    %v595 = vsel %vm563, 1, 0
    %v596 = vsel %vm564, 1, 0
    %v597 = vsel %vm565, 1, 0
    %v598 = vsel %vm566, 1, 0
    %v599 = vsel %vm567, 1, 0
    %v600 = vcvt.s32.f32 %v568
    %v601 = vcvt.s32.f32 %v569
    %v602 = vcvt.s32.f32 %v570
    %v603 = vcvt.s32.f32 %v571
    %v604 = vcvt.s32.f32 %v572
    %v605 = vcvt.s32.f32 %v573
    %v606 = vcvt.s32.f32 %v574
    %v607 = vcvt.s32.f32 %v575
    %v608 = vcvt.s32.f32 %v576
    %v609 = vcvt.s32.f32 %v577
    %v610 = vcvt.s32.f32 %v578
    %v611 = vcvt.s32.f32 %v579
    %v612 = vcvt.s32.f32 %v580
    %v613 = vcvt.s32.f32 %v581
    %v614 = vcvt.s32.f32 %v582
    %v615 = vcvt.s32.f32 %v583
    %v616 = vcvt.s32.f32 %v584
    %v617 = vcvt.s32.f32 %v585
    %v618 = vcvt.s32.f32 %v586
    %v619 = vcvt.s32.f32 %v587
    %v620 = vcvt.s32.f32 %v588
    %v621 = vcvt.s32.f32 %v589
    %v622 = vcvt.s32.f32 %v590
    %v623 = vcvt.s32.f32 %v591
    %v624 = vcvt.s32.f32 %v592
    %v625 = vcvt.s32.f32 %v593
    %v626 = vcvt.s32.f32 %v594
    %v627 = vcvt.s32.f32 %v595
    %v628 = vcvt.s32.f32 %v596
    %v629 = vcvt.s32.f32 %v597
    %v630 = vcvt.s32.f32 %v598
    %v631 = vcvt.s32.f32 %v599
    %vm632 = vcmask 392192
    %v634 = vsel %vm632, %v600, 0
    %v637 = vsel %vm632, %v601, 0
    %v640 = vsel %vm632, %v602, 0
    %v643 = vsel %vm632, %v603, 0
    %v646 = vsel %vm632, %v604, 0
    %v649 = vsel %vm632, %v605, 0
    %v652 = vsel %vm632, %v606, 0
    %v655 = vsel %vm632, %v607, 0
    %v658 = vsel %vm632, %v608, 0
    %v661 = vsel %vm632, %v609, 0
    %v664 = vsel %vm632, %v610, 0
    %v667 = vsel %vm632, %v611, 0
    %v670 = vsel %vm632, %v612, 0
    %v673 = vsel %vm632, %v613, 0
    %v676 = vsel %vm632, %v614, 0
    %v679 = vsel %vm632, %v615, 0
    %v682 = vsel %vm632, %v616, 0
    %v685 = vsel %vm632, %v617, 0
    %v688 = vsel %vm632, %v618, 0
    %v691 = vsel %vm632, %v619, 0
    %v694 = vsel %vm632, %v620, 0
    %v697 = vsel %vm632, %v621, 0
    %v700 = vsel %vm632, %v622, 0
    %v703 = vsel %vm632, %v623, 0
    %v706 = vsel %vm632, %v624, 0
    %v709 = vsel %vm632, %v625, 0
    %v712 = vsel %vm632, %v626, 0
    %v715 = vsel %vm632, %v627, 0
    %v718 = vsel %vm632, %v628, 0
    %v721 = vsel %vm632, %v629, 0
    %v724 = vsel %vm632, %v630, 0
    %v727 = vsel %vm632, %v631, 0
    %729 = vmatprep.subr.mxu0 0.0
    %730 = vmatpush1.msra.mxu0 %v118
    %731 = vmatprep.subr.mxu0 0.0
    %732 = vmatpush1.msra.mxu0 %v123
    %733 = vmatprep.subr.mxu0 0.0
    %734 = vmatpush1.msra.mxu0 %v210
    %735 = vmatprep.subr.mxu0 0.0
    %736 = vmatpush1.msra.mxu0 %v215
    %737 = vmatprep.subr.mxu0 0.0
    %738 = vmatpush1.msra.mxu0 %v302
    %739 = vmatprep.subr.mxu0 0.0
    %740 = vmatpush1.msra.mxu0 %v307
    %741 = vmatprep.subr.mxu0 0.0
    %742 = vmatpush1.msra.mxu0 0.0
    %743 = vmatprep.subr.mxu0 0.0
    %744 = vmatpush1.msra.mxu0 0.0
    %745 = vmatprep.subr.mxu0 0.0
    %746 = vmatpush1.msra.mxu0 0.0
    %747 = vmatprep.subr.mxu0 0.0
    %748 = vmatpush1.msra.mxu0 0.0
    %749 = vmatprep.subr.mxu0 0.0
    %750 = vmatpush1.msra.mxu0 0.0
    %751 = vmatprep.subr.mxu0 0.0
    %752 = vmatpush1.msra.mxu0 0.0
    %753 = vmatprep.subr.mxu0 0.0
    %754 = vmatpush1.msra.mxu0 0.0
    %755 = vmatprep.subr.mxu0 0.0
    %756 = vmatpush1.msra.mxu0 0.0
    %757 = vmatprep.subr.mxu0 0.0
    %758 = vmatpush1.msra.mxu0 0.0
    %759 = vmatprep.subr.mxu0 0.0
    %760 = vmatpush1.msra.mxu0 0.0
    %761 = vmatprep.subr.mxu0 0.0
    %762 = vmatpush1.msra.mxu0 0.0
    %763 = vmatprep.subr.mxu0 0.0
    %764 = vmatpush1.msra.mxu0 0.0
    %765 = vmatprep.subr.mxu0 0.0
    %766 = vmatpush1.msra.mxu0 0.0
    %767 = vmatprep.subr.mxu0 0.0
    %768 = vmatpush1.msra.mxu0 0.0
    %769 = vmatprep.subr.mxu0 0.0
    %770 = vmatpush1.msra.mxu0 0.0
    %771 = vmatprep.subr.mxu0 0.0
    %772 = vmatpush1.msra.mxu0 0.0
    %773 = vmatprep.subr.mxu0 0.0
    %774 = vmatpush1.msra.mxu0 0.0
    %775 = vmatprep.subr.mxu0 0.0
    %776 = vmatpush1.msra.mxu0 0.0
    %777 = vmatprep.subr.mxu0 0.0
    %778 = vmatpush1.msra.mxu0 0.0
    %779 = vmatprep.subr.mxu0 0.0
    %780 = vmatpush1.msra.mxu0 0.0
    %781 = vmatprep.subr.mxu0 0.0
    %782 = vmatpush1.msra.mxu0 0.0
    %783 = vmatprep.subr.mxu0 0.0
    %784 = vmatpush1.msra.mxu0 0.0
    %785 = vmatprep.subr.mxu0 0.0
    %786 = vmatpush1.msra.mxu0 0.0
    %787 = vmatprep.subr.mxu0 0.0
    %788 = vmatpush1.msra.mxu0 0.0
    %789 = vmatprep.subr.mxu0 0.0
    %790 = vmatpush1.msra.mxu0 0.0
    %791 = vmatprep.subr.mxu0 0.0
    %792 = vmatpush1.msra.mxu0 0.0
    %793 = vmatprep.mubr.f32.mxu0 0.0
    %794 = vmatmul.mubr.f32.gmra.mrb[0].mxu0 %v634
    %v795 = vpop.f32.mrb[0].mxu0
    %v796 = vadd.f32 0.0, %v795
    %v797 = vpop.f32.mrb[0].mxu0
    %798 = vmatprep.mubr.f32.mxu0 0.0
    %799 = vmatmul.mubr.f32.gmra.mrb[0].mxu0 %v637
    %v800 = vpop.f32.mrb[0].mxu0
    %v801 = vadd.f32 0.0, %v800
    %v802 = vpop.f32.mrb[0].mxu0
    %803 = vmatprep.mubr.f32.mxu0 0.0
    %804 = vmatmul.mubr.f32.gmra.mrb[0].mxu0 %v640
    %v805 = vpop.f32.mrb[0].mxu0
    %v806 = vadd.f32 0.0, %v805
    %v807 = vpop.f32.mrb[0].mxu0
    %808 = vmatprep.mubr.f32.mxu0 0.0
    %809 = vmatmul.mubr.f32.gmra.mrb[0].mxu0 %v643
    %v810 = vpop.f32.mrb[0].mxu0
    %v811 = vadd.f32 0.0, %v810
    %v812 = vpop.f32.mrb[0].mxu0
    %813 = vmatprep.mubr.f32.mxu0 0.0
    %814 = vmatmul.mubr.f32.gmra.mrb[0].mxu0 %v646
    %v815 = vpop.f32.mrb[0].mxu0
    %v816 = vadd.f32 0.0, %v815
    %v817 = vpop.f32.mrb[0].mxu0
    %818 = vmatprep.mubr.f32.mxu0 0.0
    %819 = vmatmul.mubr.f32.gmra.mrb[0].mxu0 %v649
    %v820 = vpop.f32.mrb[0].mxu0
    %v821 = vadd.f32 0.0, %v820
    %v822 = vpop.f32.mrb[0].mxu0
    %823 = vmatprep.mubr.f32.mxu0 0.0
    %824 = vmatmul.mubr.f32.gmra.mrb[0].mxu0 %v652
    %v825 = vpop.f32.mrb[0].mxu0
    %v826 = vadd.f32 0.0, %v825
    %v827 = vpop.f32.mrb[0].mxu0
    %828 = vmatprep.mubr.f32.mxu0 0.0
    %829 = vmatmul.mubr.f32.gmra.mrb[0].mxu0 %v655
    %v830 = vpop.f32.mrb[0].mxu0
    %v831 = vadd.f32 0.0, %v830
    %v832 = vpop.f32.mrb[0].mxu0
    %833 = vmatprep.mubr.f32.mxu0 0.0
    %834 = vmatmul.mubr.f32.gmra.mrb[0].mxu0 %v658
    %v835 = vpop.f32.mrb[0].mxu0
    %v836 = vadd.f32 0.0, %v835
    %v837 = vpop.f32.mrb[0].mxu0
    %838 = vmatprep.mubr.f32.mxu0 0.0
    %839 = vmatmul.mubr.f32.gmra.mrb[0].mxu0 %v661
    %v840 = vpop.f32.mrb[0].mxu0
    %v841 = vadd.f32 0.0, %v840
    %v842 = vpop.f32.mrb[0].mxu0
    %843 = vmatprep.mubr.f32.mxu0 0.0
    %844 = vmatmul.mubr.f32.gmra.mrb[0].mxu0 %v664
    %v845 = vpop.f32.mrb[0].mxu0
    %v846 = vadd.f32 0.0, %v845
    %v847 = vpop.f32.mrb[0].mxu0
    %848 = vmatprep.mubr.f32.mxu0 0.0
    %849 = vmatmul.mubr.f32.gmra.mrb[0].mxu0 %v667
    %v850 = vpop.f32.mrb[0].mxu0
    %v851 = vadd.f32 0.0, %v850
    %v852 = vpop.f32.mrb[0].mxu0
    %853 = vmatprep.mubr.f32.mxu0 0.0
    %854 = vmatmul.mubr.f32.gmra.mrb[0].mxu0 %v670
    %v855 = vpop.f32.mrb[0].mxu0
    %v856 = vadd.f32 0.0, %v855
    %v857 = vpop.f32.mrb[0].mxu0
    %858 = vmatprep.mubr.f32.mxu0 0.0
    %859 = vmatmul.mubr.f32.gmra.mrb[0].mxu0 %v673
    %v860 = vpop.f32.mrb[0].mxu0
    %v861 = vadd.f32 0.0, %v860
    %v862 = vpop.f32.mrb[0].mxu0
    %863 = vmatprep.mubr.f32.mxu0 0.0
    %864 = vmatmul.mubr.f32.gmra.mrb[0].mxu0 %v676
    %v865 = vpop.f32.mrb[0].mxu0
    %v866 = vadd.f32 0.0, %v865
    %v867 = vpop.f32.mrb[0].mxu0
    %868 = vmatprep.mubr.f32.mxu0 0.0
    %869 = vmatmul.mubr.f32.gmra.mrb[0].mxu0 %v679
    %v870 = vpop.f32.mrb[0].mxu0
    %v871 = vadd.f32 0.0, %v870
    %v872 = vpop.f32.mrb[0].mxu0
    %873 = vmatprep.mubr.f32.mxu0 0.0
    %874 = vmatmul.mubr.f32.gmra.mrb[0].mxu0 %v682
    %v875 = vpop.f32.mrb[0].mxu0
    %v876 = vadd.f32 0.0, %v875
    %v877 = vpop.f32.mrb[0].mxu0
    %878 = vmatprep.mubr.f32.mxu0 0.0
    %879 = vmatmul.mubr.f32.gmra.mrb[0].mxu0 %v685
    %v880 = vpop.f32.mrb[0].mxu0
    %v881 = vadd.f32 0.0, %v880
    %v882 = vpop.f32.mrb[0].mxu0
    %883 = vmatprep.mubr.f32.mxu0 0.0
    %884 = vmatmul.mubr.f32.gmra.mrb[0].mxu0 %v688
    %v885 = vpop.f32.mrb[0].mxu0
    %v886 = vadd.f32 0.0, %v885
    %v887 = vpop.f32.mrb[0].mxu0
    %888 = vmatprep.mubr.f32.mxu0 0.0
    %889 = vmatmul.mubr.f32.gmra.mrb[0].mxu0 %v691
    %v890 = vpop.f32.mrb[0].mxu0
    %v891 = vadd.f32 0.0, %v890
    %v892 = vpop.f32.mrb[0].mxu0
    %893 = vmatprep.mubr.f32.mxu0 0.0
    %894 = vmatmul.mubr.f32.gmra.mrb[0].mxu0 %v694
    %v895 = vpop.f32.mrb[0].mxu0
    %v896 = vadd.f32 0.0, %v895
    %v897 = vpop.f32.mrb[0].mxu0
    %898 = vmatprep.mubr.f32.mxu0 0.0
    %899 = vmatmul.mubr.f32.gmra.mrb[0].mxu0 %v697
    %v900 = vpop.f32.mrb[0].mxu0
    %v901 = vadd.f32 0.0, %v900
    %v902 = vpop.f32.mrb[0].mxu0
    %903 = vmatprep.mubr.f32.mxu0 0.0
    %904 = vmatmul.mubr.f32.gmra.mrb[0].mxu0 %v700
    %v905 = vpop.f32.mrb[0].mxu0
    %v906 = vadd.f32 0.0, %v905
    %v907 = vpop.f32.mrb[0].mxu0
    %908 = vmatprep.mubr.f32.mxu0 0.0
    %909 = vmatmul.mubr.f32.gmra.mrb[0].mxu0 %v703
    %v910 = vpop.f32.mrb[0].mxu0
    %v911 = vadd.f32 0.0, %v910
    %v912 = vpop.f32.mrb[0].mxu0
    %913 = vmatprep.mubr.f32.mxu0 0.0
    %914 = vmatmul.mubr.f32.gmra.mrb[0].mxu0 %v706
    %v915 = vpop.f32.mrb[0].mxu0
    %v916 = vadd.f32 0.0, %v915
    %v917 = vpop.f32.mrb[0].mxu0
    %918 = vmatprep.mubr.f32.mxu0 0.0
    %919 = vmatmul.mubr.f32.gmra.mrb[0].mxu0 %v709
    %v920 = vpop.f32.mrb[0].mxu0
    %v921 = vadd.f32 0.0, %v920
    %v922 = vpop.f32.mrb[0].mxu0
    %923 = vmatprep.mubr.f32.mxu0 0.0
    %924 = vmatmul.mubr.f32.gmra.mrb[0].mxu0 %v712
    %v925 = vpop.f32.mrb[0].mxu0
    %v926 = vadd.f32 0.0, %v925
    %v927 = vpop.f32.mrb[0].mxu0
    %928 = vmatprep.mubr.f32.mxu0 0.0
    %929 = vmatmul.mubr.f32.gmra.mrb[0].mxu0 %v715
    %v930 = vpop.f32.mrb[0].mxu0
    %v931 = vadd.f32 0.0, %v930
    %v932 = vpop.f32.mrb[0].mxu0
    %933 = vmatprep.mubr.f32.mxu0 0.0
    %934 = vmatmul.mubr.f32.gmra.mrb[0].mxu0 %v718
    %v935 = vpop.f32.mrb[0].mxu0
    %v936 = vadd.f32 0.0, %v935
    %v937 = vpop.f32.mrb[0].mxu0
    %938 = vmatprep.mubr.f32.mxu0 0.0
    %939 = vmatmul.mubr.f32.gmra.mrb[0].mxu0 %v721
    %v940 = vpop.f32.mrb[0].mxu0
    %v941 = vadd.f32 0.0, %v940
    %v942 = vpop.f32.mrb[0].mxu0
    %943 = vmatprep.mubr.f32.mxu0 0.0
    %944 = vmatmul.mubr.f32.gmra.mrb[0].mxu0 %v724
    %v945 = vpop.f32.mrb[0].mxu0
    %v946 = vadd.f32 0.0, %v945
    %v947 = vpop.f32.mrb[0].mxu0
    %948 = vmatprep.mubr.f32.mxu0 0.0
    %949 = vmatmul.mubr.f32.gmra.mrb[0].mxu0 %v727
    %v950 = vpop.f32.mrb[0].mxu0
    %v951 = vadd.f32 0.0, %v950
    %v952 = vpop.f32.mrb[0].mxu0
    %953 = vdwg.mxu0
    %vm954 = vcmp.gt.f32.partialorder %v796, 0.0
    %vm955 = vcmp.gt.f32.partialorder %v801, 0.0
    %vm956 = vcmp.gt.f32.partialorder %v806, 0.0
    %vm957 = vcmp.gt.f32.partialorder %v811, 0.0
    %vm958 = vcmp.gt.f32.partialorder %v816, 0.0
    %vm959 = vcmp.gt.f32.partialorder %v821, 0.0
    %vm960 = vcmp.gt.f32.partialorder %v826, 0.0
    %vm961 = vcmp.gt.f32.partialorder %v831, 0.0
    %vm962 = vcmp.gt.f32.partialorder %v836, 0.0
    %vm963 = vcmp.gt.f32.partialorder %v841, 0.0
    %vm964 = vcmp.gt.f32.partialorder %v846, 0.0
    %vm965 = vcmp.gt.f32.partialorder %v851, 0.0
    %vm966 = vcmp.gt.f32.partialorder %v856, 0.0
    %vm967 = vcmp.gt.f32.partialorder %v861, 0.0
    %vm968 = vcmp.gt.f32.partialorder %v866, 0.0
    %vm969 = vcmp.gt.f32.partialorder %v871, 0.0
    %vm970 = vcmp.gt.f32.partialorder %v876, 0.0
    %vm971 = vcmp.gt.f32.partialorder %v881, 0.0
    %vm972 = vcmp.gt.f32.partialorder %v886, 0.0
    %vm973 = vcmp.gt.f32.partialorder %v891, 0.0
    %vm974 = vcmp.gt.f32.partialorder %v896, 0.0
    %vm975 = vcmp.gt.f32.partialorder %v901, 0.0
    %vm976 = vcmp.gt.f32.partialorder %v906, 0.0
    %vm977 = vcmp.gt.f32.partialorder %v911, 0.0
    %vm978 = vcmp.gt.f32.partialorder %v916, 0.0
    %vm979 = vcmp.gt.f32.partialorder %v921, 0.0
    %vm980 = vcmp.gt.f32.partialorder %v926, 0.0
    %vm981 = vcmp.gt.f32.partialorder %v931, 0.0
    %vm982 = vcmp.gt.f32.partialorder %v936, 0.0
    %vm983 = vcmp.gt.f32.partialorder %v941, 0.0
    %vm984 = vcmp.gt.f32.partialorder %v946, 0.0
    %vm985 = vcmp.gt.f32.partialorder %v951, 0.0
    %v986 = vmul.f32 %v796, 0.2
    %v987 = vmul.f32 %v801, 0.2
    %v988 = vmul.f32 %v806, 0.2
    %v989 = vmul.f32 %v811, 0.2
    %v990 = vmul.f32 %v816, 0.2
    %v991 = vmul.f32 %v821, 0.2
    %v992 = vmul.f32 %v826, 0.2
    %v993 = vmul.f32 %v831, 0.2
    %v994 = vmul.f32 %v836, 0.2
    %v995 = vmul.f32 %v841, 0.2
    %v996 = vmul.f32 %v846, 0.2
    %v997 = vmul.f32 %v851, 0.2
    %v998 = vmul.f32 %v856, 0.2
    %v999 = vmul.f32 %v861, 0.2
    %v1000 = vmul.f32 %v866, 0.2
    %v1001 = vmul.f32 %v871, 0.2
    %v1002 = vmul.f32 %v876, 0.2
    %v1003 = vmul.f32 %v881, 0.2
    %v1004 = vmul.f32 %v886, 0.2
    %v1005 = vmul.f32 %v891, 0.2
    %v1006 = vmul.f32 %v896, 0.2
    %v1007 = vmul.f32 %v901, 0.2
    %v1008 = vmul.f32 %v906, 0.2
    %v1009 = vmul.f32 %v911, 0.2
    %v1010 = vmul.f32 %v916, 0.2
    %v1011 = vmul.f32 %v921, 0.2
    %v1012 = vmul.f32 %v926, 0.2
    %v1013 = vmul.f32 %v931, 0.2
    %v1014 = vmul.f32 %v936, 0.2
    %v1015 = vmul.f32 %v941, 0.2
    %v1016 = vmul.f32 %v946, 0.2
    %v1017 = vmul.f32 %v951, 0.2
    %v1018 = vsel %vm954, %v796, %v986
    %v1019 = vsel %vm955, %v801, %v987
    %v1020 = vsel %vm956, %v806, %v988
    %v1021 = vsel %vm957, %v811, %v989
    %v1022 = vsel %vm958, %v816, %v990
    %v1023 = vsel %vm959, %v821, %v991
    %v1024 = vsel %vm960, %v826, %v992
    %v1025 = vsel %vm961, %v831, %v993
    %v1026 = vsel %vm962, %v836, %v994
    %v1027 = vsel %vm963, %v841, %v995
    %v1028 = vsel %vm964, %v846, %v996
    %v1029 = vsel %vm965, %v851, %v997
    %v1030 = vsel %vm966, %v856, %v998
    %v1031 = vsel %vm967, %v861, %v999
    %v1032 = vsel %vm968, %v866, %v1000
    %v1033 = vsel %vm969, %v871, %v1001
    %v1034 = vsel %vm970, %v876, %v1002
    %v1035 = vsel %vm971, %v881, %v1003
    %v1036 = vsel %vm972, %v886, %v1004
    %v1037 = vsel %vm973, %v891, %v1005
    %v1038 = vsel %vm974, %v896, %v1006
    %v1039 = vsel %vm975, %v901, %v1007
    %v1040 = vsel %vm976, %v906, %v1008
    %v1041 = vsel %vm977, %v911, %v1009
    %v1042 = vsel %vm978, %v916, %v1010
    %v1043 = vsel %vm979, %v921, %v1011
    %v1044 = vsel %vm980, %v926, %v1012
    %v1045 = vsel %vm981, %v931, %v1013
    %v1046 = vsel %vm982, %v936, %v1014
    %v1047 = vsel %vm983, %v941, %v1015
    %v1048 = vsel %vm984, %v946, %v1016
    %v1049 = vsel %vm985, %v951, %v1017
    %v1050 = vxor.u32 %v1018, 2147483648
    %v1051 = vxor.u32 %v1019, 2147483648
    %v1052 = vxor.u32 %v1020, 2147483648
    %v1053 = vxor.u32 %v1021, 2147483648
    %v1054 = vxor.u32 %v1022, 2147483648
    %v1055 = vxor.u32 %v1023, 2147483648
    %v1056 = vxor.u32 %v1024, 2147483648
    %v1057 = vxor.u32 %v1025, 2147483648
    %v1058 = vxor.u32 %v1026, 2147483648
    %v1059 = vxor.u32 %v1027, 2147483648
    %v1060 = vxor.u32 %v1028, 2147483648
    %v1061 = vxor.u32 %v1029, 2147483648
    %v1062 = vxor.u32 %v1030, 2147483648
    %v1063 = vxor.u32 %v1031, 2147483648
    %v1064 = vxor.u32 %v1032, 2147483648
    %v1065 = vxor.u32 %v1033, 2147483648
    %v1066 = vxor.u32 %v1034, 2147483648
    %v1067 = vxor.u32 %v1035, 2147483648
    %v1068 = vxor.u32 %v1036, 2147483648
    %v1069 = vxor.u32 %v1037, 2147483648
    %v1070 = vxor.u32 %v1038, 2147483648
    %v1071 = vxor.u32 %v1039, 2147483648
    %v1072 = vxor.u32 %v1040, 2147483648
    %v1073 = vxor.u32 %v1041, 2147483648
    %v1074 = vxor.u32 %v1042, 2147483648
    %v1075 = vxor.u32 %v1043, 2147483648
    %v1076 = vxor.u32 %v1044, 2147483648
    %v1077 = vxor.u32 %v1045, 2147483648
    %v1078 = vxor.u32 %v1046, 2147483648
    %v1079 = vxor.u32 %v1047, 2147483648
    %v1080 = vxor.u32 %v1048, 2147483648
    %v1081 = vxor.u32 %v1049, 2147483648
    %v1082 = vmul.f32 %v1050, 1.442695
    %v1083 = vpow.pop %v1082
    %v1084 = vmul.f32 %v1051, 1.442695
    %v1085 = vpow.pop %v1084
    %v1086 = vmul.f32 %v1052, 1.442695
    %v1087 = vpow.pop %v1086
    %v1088 = vmul.f32 %v1053, 1.442695
    %v1089 = vpow.pop %v1088
    %v1090 = vmul.f32 %v1054, 1.442695
    %v1091 = vpow.pop %v1090
    %v1092 = vmul.f32 %v1055, 1.442695
    %v1093 = vpow.pop %v1092
    %v1094 = vmul.f32 %v1056, 1.442695
    %v1095 = vpow.pop %v1094
    %v1096 = vmul.f32 %v1057, 1.442695
    %v1097 = vpow.pop %v1096
    %v1098 = vmul.f32 %v1058, 1.442695
    %v1099 = vpow.pop %v1098
    %v1100 = vmul.f32 %v1059, 1.442695
    %v1101 = vpow.pop %v1100
    %v1102 = vmul.f32 %v1060, 1.442695
    %v1103 = vpow.pop %v1102
    %v1104 = vmul.f32 %v1061, 1.442695
    %v1105 = vpow.pop %v1104
    %v1106 = vmul.f32 %v1062, 1.442695
    %v1107 = vpow.pop %v1106
    %v1108 = vmul.f32 %v1063, 1.442695
    %v1109 = vpow.pop %v1108
    %v1110 = vmul.f32 %v1064, 1.442695
    %v1111 = vpow.pop %v1110
    %v1112 = vmul.f32 %v1065, 1.442695
    %v1113 = vpow.pop %v1112
    %v1114 = vmul.f32 %v1066, 1.442695
    %v1115 = vpow.pop %v1114
    %v1116 = vmul.f32 %v1067, 1.442695
    %v1117 = vpow.pop %v1116
    %v1118 = vmul.f32 %v1068, 1.442695
    %v1119 = vpow.pop %v1118
    %v1120 = vmul.f32 %v1069, 1.442695
    %v1121 = vpow.pop %v1120
    %v1122 = vmul.f32 %v1070, 1.442695
    %v1123 = vpow.pop %v1122
    %v1124 = vmul.f32 %v1071, 1.442695
    %v1125 = vpow.pop %v1124
    %v1126 = vmul.f32 %v1072, 1.442695
    %v1127 = vpow.pop %v1126
    %v1128 = vmul.f32 %v1073, 1.442695
    %v1129 = vpow.pop %v1128
    %v1130 = vmul.f32 %v1074, 1.442695
    %v1131 = vpow.pop %v1130
    %v1132 = vmul.f32 %v1075, 1.442695
    %v1133 = vpow.pop %v1132
    %v1134 = vmul.f32 %v1076, 1.442695
    %v1135 = vpow.pop %v1134
    %v1136 = vmul.f32 %v1077, 1.442695
    %v1137 = vpow.pop %v1136
    %v1138 = vmul.f32 %v1078, 1.442695
    %v1139 = vpow.pop %v1138
    %v1140 = vmul.f32 %v1079, 1.442695
    %v1141 = vpow.pop %v1140
    %v1142 = vmul.f32 %v1080, 1.442695
    %v1143 = vpow.pop %v1142
    %v1144 = vmul.f32 %v1081, 1.442695
    %v1145 = vpow.pop %v1144
    %v1146 = vadd.f32 %v1083, 1.0
    %v1147 = vadd.f32 %v1085, 1.0
    %v1148 = vadd.f32 %v1087, 1.0
    %v1149 = vadd.f32 %v1089, 1.0
    %v1150 = vadd.f32 %v1091, 1.0
    %v1151 = vadd.f32 %v1093, 1.0
    %v1152 = vadd.f32 %v1095, 1.0
    %v1153 = vadd.f32 %v1097, 1.0
    %v1154 = vadd.f32 %v1099, 1.0
    %v1155 = vadd.f32 %v1101, 1.0
    %v1156 = vadd.f32 %v1103, 1.0
    %v1157 = vadd.f32 %v1105, 1.0
    %v1158 = vadd.f32 %v1107, 1.0
    %v1159 = vadd.f32 %v1109, 1.0
    %v1160 = vadd.f32 %v1111, 1.0
    %v1161 = vadd.f32 %v1113, 1.0
    %v1162 = vadd.f32 %v1115, 1.0
    %v1163 = vadd.f32 %v1117, 1.0
    %v1164 = vadd.f32 %v1119, 1.0
    %v1165 = vadd.f32 %v1121, 1.0
    %v1166 = vadd.f32 %v1123, 1.0
    %v1167 = vadd.f32 %v1125, 1.0
    %v1168 = vadd.f32 %v1127, 1.0
    %v1169 = vadd.f32 %v1129, 1.0
    %v1170 = vadd.f32 %v1131, 1.0
    %v1171 = vadd.f32 %v1133, 1.0
    %v1172 = vadd.f32 %v1135, 1.0
    %v1173 = vadd.f32 %v1137, 1.0
    %v1174 = vadd.f32 %v1139, 1.0
    %v1175 = vadd.f32 %v1141, 1.0
    %v1176 = vadd.f32 %v1143, 1.0
    %v1177 = vadd.f32 %v1145, 1.0
    %v1178 = vrcp.pop %v1146
    %v1179 = vmul.f32 1.0, %v1178
    %v1180 = vrcp.pop %v1147
    %v1181 = vmul.f32 1.0, %v1180
    %v1182 = vrcp.pop %v1148
    %v1183 = vmul.f32 1.0, %v1182
    %v1184 = vrcp.pop %v1149
    %v1185 = vmul.f32 1.0, %v1184
    %v1186 = vrcp.pop %v1150
    %v1187 = vmul.f32 1.0, %v1186
    %v1188 = vrcp.pop %v1151
    %v1189 = vmul.f32 1.0, %v1188
    %v1190 = vrcp.pop %v1152
    %v1191 = vmul.f32 1.0, %v1190
    %v1192 = vrcp.pop %v1153
    %v1193 = vmul.f32 1.0, %v1192
    %v1194 = vrcp.pop %v1154
    %v1195 = vmul.f32 1.0, %v1194
    %v1196 = vrcp.pop %v1155
    %v1197 = vmul.f32 1.0, %v1196
    %v1198 = vrcp.pop %v1156
    %v1199 = vmul.f32 1.0, %v1198
    %v1200 = vrcp.pop %v1157
    %v1201 = vmul.f32 1.0, %v1200
    %v1202 = vrcp.pop %v1158
    %v1203 = vmul.f32 1.0, %v1202
    %v1204 = vrcp.pop %v1159
    %v1205 = vmul.f32 1.0, %v1204
    %v1206 = vrcp.pop %v1160
    %v1207 = vmul.f32 1.0, %v1206
    %v1208 = vrcp.pop %v1161
    %v1209 = vmul.f32 1.0, %v1208
    %v1210 = vrcp.pop %v1162
    %v1211 = vmul.f32 1.0, %v1210
    %v1212 = vrcp.pop %v1163
    %v1213 = vmul.f32 1.0, %v1212
    %v1214 = vrcp.pop %v1164
    %v1215 = vmul.f32 1.0, %v1214
    %v1216 = vrcp.pop %v1165
    %v1217 = vmul.f32 1.0, %v1216
    %v1218 = vrcp.pop %v1166
    %v1219 = vmul.f32 1.0, %v1218
    %v1220 = vrcp.pop %v1167
    %v1221 = vmul.f32 1.0, %v1220
    %v1222 = vrcp.pop %v1168
    %v1223 = vmul.f32 1.0, %v1222
    %v1224 = vrcp.pop %v1169
    %v1225 = vmul.f32 1.0, %v1224
    %v1226 = vrcp.pop %v1170
    %v1227 = vmul.f32 1.0, %v1226
    %v1228 = vrcp.pop %v1171
    %v1229 = vmul.f32 1.0, %v1228
    %v1230 = vrcp.pop %v1172
    %v1231 = vmul.f32 1.0, %v1230
    %v1232 = vrcp.pop %v1173
    %v1233 = vmul.f32 1.0, %v1232
    %v1234 = vrcp.pop %v1174
    %v1235 = vmul.f32 1.0, %v1234
    %v1236 = vrcp.pop %v1175
    %v1237 = vmul.f32 1.0, %v1236
    %v1238 = vrcp.pop %v1176
    %v1239 = vmul.f32 1.0, %v1238
    %v1240 = vrcp.pop %v1177
    %v1241 = vmul.f32 1.0, %v1240
    %v1242 = vld [vmem:[%s3] sm:$0xff]
    %v1243 = vld [vmem:[%s3 + $0x8] sm:$0xff]
    %v1244 = vld [vmem:[%s3 + $0x10] sm:$0xff]
    %v1245 = vld [vmem:[%s3 + $0x18] sm:$0xff]
    %v1246 = vld [vmem:[%s3 + $0x20] sm:$0xff]
    %v1247 = vld [vmem:[%s3 + $0x28] sm:$0xff]
    %v1248 = vld [vmem:[%s3 + $0x30] sm:$0xff]
    %v1249 = vld [vmem:[%s3 + $0x38] sm:$0xff]
    %v1250 = vld [vmem:[%s3 + $0x40] sm:$0xff]
    %v1251 = vld [vmem:[%s3 + $0x48] sm:$0xff]
    %v1252 = vld [vmem:[%s3 + $0x50] sm:$0xff]
    %v1253 = vld [vmem:[%s3 + $0x58] sm:$0xff]
    %v1254 = vld [vmem:[%s3 + $0x60] sm:$0xff]
    %v1255 = vld [vmem:[%s3 + $0x68] sm:$0xff]
    %v1256 = vld [vmem:[%s3 + $0x70] sm:$0xff]
    %v1257 = vld [vmem:[%s3 + $0x78] sm:$0xff]
    %v1258 = vld [vmem:[%s3 + $0x80] sm:$0xff]
    %v1259 = vld [vmem:[%s3 + $0x88] sm:$0xff]
    %v1260 = vld [vmem:[%s3 + $0x90] sm:$0xff]
    %v1261 = vld [vmem:[%s3 + $0x98] sm:$0xff]
    %v1262 = vld [vmem:[%s3 + $0xa0] sm:$0xff]
    %v1263 = vld [vmem:[%s3 + $0xa8] sm:$0xff]
    %v1264 = vld [vmem:[%s3 + $0xb0] sm:$0xff]
    %v1265 = vld [vmem:[%s3 + $0xb8] sm:$0xff]
    %v1266 = vld [vmem:[%s3 + $0xc0] sm:$0xff]
    %v1267 = vld [vmem:[%s3 + $0xc8] sm:$0xff]
    %v1268 = vld [vmem:[%s3 + $0xd0] sm:$0xff]
    %v1269 = vld [vmem:[%s3 + $0xd8] sm:$0xff]
    %v1270 = vld [vmem:[%s3 + $0xe0] sm:$0xff]
    %v1271 = vld [vmem:[%s3 + $0xe8] sm:$0xff]
    %v1272 = vld [vmem:[%s3 + $0xf0] sm:$0xff]
    %v1273 = vld [vmem:[%s3 + $0xf8] sm:$0xff]
    %1275 = vset.pattern.permute.xlu0 0
    %1276 = vperm.xlu0 %1275, %v1242
    %v1277 = vpop.permute.xlu0 %1276
    %1280 = vset.pattern.permute.xlu0 0
    %1281 = vperm.xlu0 %1280, %v1243
    %v1282 = vpop.permute.xlu0 %1281
    %1285 = vset.pattern.permute.xlu0 0
    %1286 = vperm.xlu0 %1285, %v1244
    %v1287 = vpop.permute.xlu0 %1286
    %1290 = vset.pattern.permute.xlu0 0
    %1291 = vperm.xlu0 %1290, %v1245
    %v1292 = vpop.permute.xlu0 %1291
    %1295 = vset.pattern.permute.xlu0 0
    %1296 = vperm.xlu0 %1295, %v1246
    %v1297 = vpop.permute.xlu0 %1296
    %1300 = vset.pattern.permute.xlu0 0
    %1301 = vperm.xlu0 %1300, %v1247
    %v1302 = vpop.permute.xlu0 %1301
    %1305 = vset.pattern.permute.xlu0 0
    %1306 = vperm.xlu0 %1305, %v1248
    %v1307 = vpop.permute.xlu0 %1306
    %1310 = vset.pattern.permute.xlu0 0
    %1311 = vperm.xlu0 %1310, %v1249
    %v1312 = vpop.permute.xlu0 %1311
    %1315 = vset.pattern.permute.xlu0 0
    %1316 = vperm.xlu0 %1315, %v1250
    %v1317 = vpop.permute.xlu0 %1316
    %1320 = vset.pattern.permute.xlu0 0
    %1321 = vperm.xlu0 %1320, %v1251
    %v1322 = vpop.permute.xlu0 %1321
    %1325 = vset.pattern.permute.xlu0 0
    %1326 = vperm.xlu0 %1325, %v1252
    %v1327 = vpop.permute.xlu0 %1326
    %1330 = vset.pattern.permute.xlu0 0
    %1331 = vperm.xlu0 %1330, %v1253
    %v1332 = vpop.permute.xlu0 %1331
    %1335 = vset.pattern.permute.xlu0 0
    %1336 = vperm.xlu0 %1335, %v1254
    %v1337 = vpop.permute.xlu0 %1336
    %1340 = vset.pattern.permute.xlu0 0
    %1341 = vperm.xlu0 %1340, %v1255
    %v1342 = vpop.permute.xlu0 %1341
    %1345 = vset.pattern.permute.xlu0 0
    %1346 = vperm.xlu0 %1345, %v1256
    %v1347 = vpop.permute.xlu0 %1346
    %1350 = vset.pattern.permute.xlu0 0
    %1351 = vperm.xlu0 %1350, %v1257
    %v1352 = vpop.permute.xlu0 %1351
    %1355 = vset.pattern.permute.xlu0 0
    %1356 = vperm.xlu0 %1355, %v1258
    %v1357 = vpop.permute.xlu0 %1356
    %1360 = vset.pattern.permute.xlu0 0
    %1361 = vperm.xlu0 %1360, %v1259
    %v1362 = vpop.permute.xlu0 %1361
    %1365 = vset.pattern.permute.xlu0 0
    %1366 = vperm.xlu0 %1365, %v1260
    %v1367 = vpop.permute.xlu0 %1366
    %1370 = vset.pattern.permute.xlu0 0
    %1371 = vperm.xlu0 %1370, %v1261
    %v1372 = vpop.permute.xlu0 %1371
    %1375 = vset.pattern.permute.xlu0 0
    %1376 = vperm.xlu0 %1375, %v1262
    %v1377 = vpop.permute.xlu0 %1376
    %1380 = vset.pattern.permute.xlu0 0
    %1381 = vperm.xlu0 %1380, %v1263
    %v1382 = vpop.permute.xlu0 %1381
    %1385 = vset.pattern.permute.xlu0 0
    %1386 = vperm.xlu0 %1385, %v1264
    %v1387 = vpop.permute.xlu0 %1386
    %1390 = vset.pattern.permute.xlu0 0
    %1391 = vperm.xlu0 %1390, %v1265
    %v1392 = vpop.permute.xlu0 %1391
    %1395 = vset.pattern.permute.xlu0 0
    %1396 = vperm.xlu0 %1395, %v1266
    %v1397 = vpop.permute.xlu0 %1396
    %1400 = vset.pattern.permute.xlu0 0
    %1401 = vperm.xlu0 %1400, %v1267
    %v1402 = vpop.permute.xlu0 %1401
    %1405 = vset.pattern.permute.xlu0 0
    %1406 = vperm.xlu0 %1405, %v1268
    %v1407 = vpop.permute.xlu0 %1406
    %1410 = vset.pattern.permute.xlu0 0
    %1411 = vperm.xlu0 %1410, %v1269
    %v1412 = vpop.permute.xlu0 %1411
    %1415 = vset.pattern.permute.xlu0 0
    %1416 = vperm.xlu0 %1415, %v1270
    %v1417 = vpop.permute.xlu0 %1416
    %1420 = vset.pattern.permute.xlu0 0
    %1421 = vperm.xlu0 %1420, %v1271
    %v1422 = vpop.permute.xlu0 %1421
    %1425 = vset.pattern.permute.xlu0 0
    %1426 = vperm.xlu0 %1425, %v1272
    %v1427 = vpop.permute.xlu0 %1426
    %1430 = vset.pattern.permute.xlu0 0
    %1431 = vperm.xlu0 %1430, %v1273
    %v1432 = vpop.permute.xlu0 %1431
    %v1434 = vmul.f32 %v1179, %v1277
    %v1435 = vmul.f32 %v1181, %v1282
    %v1436 = vmul.f32 %v1183, %v1287
    %v1437 = vmul.f32 %v1185, %v1292
    %v1438 = vmul.f32 %v1187, %v1297
    %v1439 = vmul.f32 %v1189, %v1302
    %v1440 = vmul.f32 %v1191, %v1307
    %v1441 = vmul.f32 %v1193, %v1312
    %v1442 = vmul.f32 %v1195, %v1317
    %v1443 = vmul.f32 %v1197, %v1322
    %v1444 = vmul.f32 %v1199, %v1327
    %v1445 = vmul.f32 %v1201, %v1332
    %v1446 = vmul.f32 %v1203, %v1337
    %v1447 = vmul.f32 %v1205, %v1342
    %v1448 = vmul.f32 %v1207, %v1347
    %v1449 = vmul.f32 %v1209, %v1352
    %v1450 = vmul.f32 %v1211, %v1357
    %v1451 = vmul.f32 %v1213, %v1362
    %v1452 = vmul.f32 %v1215, %v1367
    %v1453 = vmul.f32 %v1217, %v1372
    %v1454 = vmul.f32 %v1219, %v1377
    %v1455 = vmul.f32 %v1221, %v1382
    %v1456 = vmul.f32 %v1223, %v1387
    %v1457 = vmul.f32 %v1225, %v1392
    %v1458 = vmul.f32 %v1227, %v1397
    %v1459 = vmul.f32 %v1229, %v1402
    %v1460 = vmul.f32 %v1231, %v1407
    %v1461 = vmul.f32 %v1233, %v1412
    %v1462 = vmul.f32 %v1235, %v1417
    %v1463 = vmul.f32 %v1237, %v1422
    %v1464 = vmul.f32 %v1239, %v1427
    %v1465 = vmul.f32 %v1241, %v1432
    %v1466 = vld [vmem:[%s6] sm:$0xff]
    %1499 = vrot.lane.b32.xlu0 %v1434, 64
    %v1500 = vpop.permute.xlu0 %1499
    %1501 = vrot.lane.b32.xlu0 %v1435, 64
    %v1502 = vpop.permute.xlu0 %1501
    %1503 = vrot.lane.b32.xlu0 %v1436, 64
    %v1504 = vpop.permute.xlu0 %1503
    %1505 = vrot.lane.b32.xlu0 %v1437, 64
    %v1506 = vpop.permute.xlu0 %1505
    %1507 = vrot.lane.b32.xlu0 %v1438, 64
    %v1508 = vpop.permute.xlu0 %1507
    %1509 = vrot.lane.b32.xlu0 %v1439, 64
    %v1510 = vpop.permute.xlu0 %1509
    %1511 = vrot.lane.b32.xlu0 %v1440, 64
    %v1512 = vpop.permute.xlu0 %1511
    %1513 = vrot.lane.b32.xlu0 %v1441, 64
    %v1514 = vpop.permute.xlu0 %1513
    %1515 = vrot.lane.b32.xlu0 %v1442, 64
    %v1516 = vpop.permute.xlu0 %1515
    %1517 = vrot.lane.b32.xlu0 %v1443, 64
    %v1518 = vpop.permute.xlu0 %1517
    %1519 = vrot.lane.b32.xlu0 %v1444, 64
    %v1520 = vpop.permute.xlu0 %1519
    %1521 = vrot.lane.b32.xlu0 %v1445, 64
    %v1522 = vpop.permute.xlu0 %1521
    %1523 = vrot.lane.b32.xlu0 %v1446, 64
    %v1524 = vpop.permute.xlu0 %1523
    %1525 = vrot.lane.b32.xlu0 %v1447, 64
    %v1526 = vpop.permute.xlu0 %1525
    %1527 = vrot.lane.b32.xlu0 %v1448, 64
    %v1528 = vpop.permute.xlu0 %1527
    %1529 = vrot.lane.b32.xlu0 %v1449, 64
    %v1530 = vpop.permute.xlu0 %1529
    %1531 = vrot.lane.b32.xlu0 %v1450, 64
    %v1532 = vpop.permute.xlu0 %1531
    %1533 = vrot.lane.b32.xlu0 %v1451, 64
    %v1534 = vpop.permute.xlu0 %1533
    %1535 = vrot.lane.b32.xlu0 %v1452, 64
    %v1536 = vpop.permute.xlu0 %1535
    %1537 = vrot.lane.b32.xlu0 %v1453, 64
    %v1538 = vpop.permute.xlu0 %1537
    %1539 = vrot.lane.b32.xlu0 %v1454, 64
    %v1540 = vpop.permute.xlu0 %1539
    %1541 = vrot.lane.b32.xlu0 %v1455, 64
    %v1542 = vpop.permute.xlu0 %1541
    %1543 = vrot.lane.b32.xlu0 %v1456, 64
    %v1544 = vpop.permute.xlu0 %1543
    %1545 = vrot.lane.b32.xlu0 %v1457, 64
    %v1546 = vpop.permute.xlu0 %1545
    %1547 = vrot.lane.b32.xlu0 %v1458, 64
    %v1548 = vpop.permute.xlu0 %1547
    %1549 = vrot.lane.b32.xlu0 %v1459, 64
    %v1550 = vpop.permute.xlu0 %1549
    %1551 = vrot.lane.b32.xlu0 %v1460, 64
    %v1552 = vpop.permute.xlu0 %1551
    %1553 = vrot.lane.b32.xlu0 %v1461, 64
    %v1554 = vpop.permute.xlu0 %1553
    %1555 = vrot.lane.b32.xlu0 %v1462, 64
    %v1556 = vpop.permute.xlu0 %1555
    %1557 = vrot.lane.b32.xlu0 %v1463, 64
    %v1558 = vpop.permute.xlu0 %1557
    %1559 = vrot.lane.b32.xlu0 %v1464, 64
    %v1560 = vpop.permute.xlu0 %1559
    %1561 = vrot.lane.b32.xlu0 %v1465, 64
    %v1562 = vpop.permute.xlu0 %1561
    %vm1563 = vcmask 64512
    %v1564 = vsel %vm1563, %v1500, 0
    %v1566 = vsel %vm1563, %v1502, 0
    %v1568 = vsel %vm1563, %v1504, 0
    %v1570 = vsel %vm1563, %v1506, 0
    %v1572 = vsel %vm1563, %v1508, 0
    %v1574 = vsel %vm1563, %v1510, 0
    %v1576 = vsel %vm1563, %v1512, 0
    %v1578 = vsel %vm1563, %v1514, 0
    %v1580 = vsel %vm1563, %v1516, 0
    %v1582 = vsel %vm1563, %v1518, 0
    %v1584 = vsel %vm1563, %v1520, 0
    %v1586 = vsel %vm1563, %v1522, 0
    %v1588 = vsel %vm1563, %v1524, 0
    %v1590 = vsel %vm1563, %v1526, 0
    %v1592 = vsel %vm1563, %v1528, 0
    %v1594 = vsel %vm1563, %v1530, 0
    %v1596 = vsel %vm1563, %v1532, 0
    %v1598 = vsel %vm1563, %v1534, 0
    %v1600 = vsel %vm1563, %v1536, 0
    %v1602 = vsel %vm1563, %v1538, 0
    %v1604 = vsel %vm1563, %v1540, 0
    %v1606 = vsel %vm1563, %v1542, 0
    %v1608 = vsel %vm1563, %v1544, 0
    %v1610 = vsel %vm1563, %v1546, 0
    %v1612 = vsel %vm1563, %v1548, 0
    %v1614 = vsel %vm1563, %v1550, 0
    %v1616 = vsel %vm1563, %v1552, 0
    %v1618 = vsel %vm1563, %v1554, 0
    %v1620 = vsel %vm1563, %v1556, 0
    %v1622 = vsel %vm1563, %v1558, 0
    %v1624 = vsel %vm1563, %v1560, 0
    %v1626 = vsel %vm1563, %v1562, 0
    %1628 = vmatprep.subr.mxu0 0.0
    %1629 = vmatpush1.msra.mxu0 %v1466
    %1630 = vmatprep.subr.mxu0 0.0
    %1631 = vmatpush1.msra.mxu0 0.0
    %1632 = vmatprep.subr.mxu0 0.0
    %1633 = vmatpush1.msra.mxu0 0.0
    %1634 = vmatprep.subr.mxu0 0.0
    %1635 = vmatpush1.msra.mxu0 0.0
    %1636 = vmatprep.subr.mxu0 0.0
    %1637 = vmatpush1.msra.mxu0 0.0
    %1638 = vmatprep.subr.mxu0 0.0
    %1639 = vmatpush1.msra.mxu0 0.0
    %1640 = vmatprep.subr.mxu0 0.0
    %1641 = vmatpush1.msra.mxu0 0.0
    %1642 = vmatprep.subr.mxu0 0.0
    %1643 = vmatpush1.msra.mxu0 0.0
    %1644 = vmatprep.subr.mxu0 0.0
    %1645 = vmatpush1.msra.mxu0 0.0
    %1646 = vmatprep.subr.mxu0 0.0
    %1647 = vmatpush1.msra.mxu0 0.0
    %1648 = vmatprep.subr.mxu0 0.0
    %1649 = vmatpush1.msra.mxu0 0.0
    %1650 = vmatprep.subr.mxu0 0.0
    %1651 = vmatpush1.msra.mxu0 0.0
    %1652 = vmatprep.subr.mxu0 0.0
    %1653 = vmatpush1.msra.mxu0 0.0
    %1654 = vmatprep.subr.mxu0 0.0
    %1655 = vmatpush1.msra.mxu0 0.0
    %1656 = vmatprep.subr.mxu0 0.0
    %1657 = vmatpush1.msra.mxu0 0.0
    %1658 = vmatprep.subr.mxu0 0.0
    %1659 = vmatpush1.msra.mxu0 0.0
    %1660 = vmatprep.subr.mxu0 0.0
    %1661 = vmatpush1.msra.mxu0 0.0
    %1662 = vmatprep.subr.mxu0 0.0
    %1663 = vmatpush1.msra.mxu0 0.0
    %1664 = vmatprep.subr.mxu0 0.0
    %1665 = vmatpush1.msra.mxu0 0.0
    %1666 = vmatprep.subr.mxu0 0.0
    %1667 = vmatpush1.msra.mxu0 0.0
    %1668 = vmatprep.subr.mxu0 0.0
    %1669 = vmatpush1.msra.mxu0 0.0
    %1670 = vmatprep.subr.mxu0 0.0
    %1671 = vmatpush1.msra.mxu0 0.0
    %1672 = vmatprep.subr.mxu0 0.0
    %1673 = vmatpush1.msra.mxu0 0.0
    %1674 = vmatprep.subr.mxu0 0.0
    %1675 = vmatpush1.msra.mxu0 0.0
    %1676 = vmatprep.subr.mxu0 0.0
    %1677 = vmatpush1.msra.mxu0 0.0
    %1678 = vmatprep.subr.mxu0 0.0
    %1679 = vmatpush1.msra.mxu0 0.0
    %1680 = vmatprep.subr.mxu0 0.0
    %1681 = vmatpush1.msra.mxu0 0.0
    %1682 = vmatprep.subr.mxu0 0.0
    %1683 = vmatpush1.msra.mxu0 0.0
    %1684 = vmatprep.subr.mxu0 0.0
    %1685 = vmatpush1.msra.mxu0 0.0
    %1686 = vmatprep.subr.mxu0 0.0
    %1687 = vmatpush1.msra.mxu0 0.0
    %1688 = vmatprep.subr.mxu0 0.0
    %1689 = vmatpush1.msra.mxu0 0.0
    %1690 = vmatprep.subr.mxu0 0.0
    %1691 = vmatpush1.msra.mxu0 0.0
    %1692 = vmatprep.mubr.f32.mxu0 0.0
    %1693 = vmatmul.mubr.f32.gmra.mrb[0].mxu0 %v1564
    %v1694 = vpop.f32.mrb[0].mxu0
    %v1695 = vadd.f32 0.0, %v1694
    %v1696 = vpop.f32.mrb[0].mxu0
    %1697 = vmatprep.mubr.f32.mxu0 0.0
    %1698 = vmatmul.mubr.f32.gmra.mrb[0].mxu0 %v1566
    %v1699 = vpop.f32.mrb[0].mxu0
    %v1700 = vadd.f32 0.0, %v1699
    %v1701 = vpop.f32.mrb[0].mxu0
    %1702 = vmatprep.mubr.f32.mxu0 0.0
    %1703 = vmatmul.mubr.f32.gmra.mrb[0].mxu0 %v1568
    %v1704 = vpop.f32.mrb[0].mxu0
    %v1705 = vadd.f32 0.0, %v1704
    %v1706 = vpop.f32.mrb[0].mxu0
    %1707 = vmatprep.mubr.f32.mxu0 0.0
    %1708 = vmatmul.mubr.f32.gmra.mrb[0].mxu0 %v1570
    %v1709 = vpop.f32.mrb[0].mxu0
    %v1710 = vadd.f32 0.0, %v1709
    %v1711 = vpop.f32.mrb[0].mxu0
    %1712 = vmatprep.mubr.f32.mxu0 0.0
    %1713 = vmatmul.mubr.f32.gmra.mrb[0].mxu0 %v1572
    %v1714 = vpop.f32.mrb[0].mxu0
    %v1715 = vadd.f32 0.0, %v1714
    %v1716 = vpop.f32.mrb[0].mxu0
    %1717 = vmatprep.mubr.f32.mxu0 0.0
    %1718 = vmatmul.mubr.f32.gmra.mrb[0].mxu0 %v1574
    %v1719 = vpop.f32.mrb[0].mxu0
    %v1720 = vadd.f32 0.0, %v1719
    %v1721 = vpop.f32.mrb[0].mxu0
    %1722 = vmatprep.mubr.f32.mxu0 0.0
    %1723 = vmatmul.mubr.f32.gmra.mrb[0].mxu0 %v1576
    %v1724 = vpop.f32.mrb[0].mxu0
    %v1725 = vadd.f32 0.0, %v1724
    %v1726 = vpop.f32.mrb[0].mxu0
    %1727 = vmatprep.mubr.f32.mxu0 0.0
    %1728 = vmatmul.mubr.f32.gmra.mrb[0].mxu0 %v1578
    %v1729 = vpop.f32.mrb[0].mxu0
    %v1730 = vadd.f32 0.0, %v1729
    %v1731 = vpop.f32.mrb[0].mxu0
    %1732 = vmatprep.mubr.f32.mxu0 0.0
    %1733 = vmatmul.mubr.f32.gmra.mrb[0].mxu0 %v1580
    %v1734 = vpop.f32.mrb[0].mxu0
    %v1735 = vadd.f32 0.0, %v1734
    %v1736 = vpop.f32.mrb[0].mxu0
    %1737 = vmatprep.mubr.f32.mxu0 0.0
    %1738 = vmatmul.mubr.f32.gmra.mrb[0].mxu0 %v1582
    %v1739 = vpop.f32.mrb[0].mxu0
    %v1740 = vadd.f32 0.0, %v1739
    %v1741 = vpop.f32.mrb[0].mxu0
    %1742 = vmatprep.mubr.f32.mxu0 0.0
    %1743 = vmatmul.mubr.f32.gmra.mrb[0].mxu0 %v1584
    %v1744 = vpop.f32.mrb[0].mxu0
    %v1745 = vadd.f32 0.0, %v1744
    %v1746 = vpop.f32.mrb[0].mxu0
    %1747 = vmatprep.mubr.f32.mxu0 0.0
    %1748 = vmatmul.mubr.f32.gmra.mrb[0].mxu0 %v1586
    %v1749 = vpop.f32.mrb[0].mxu0
    %v1750 = vadd.f32 0.0, %v1749
    %v1751 = vpop.f32.mrb[0].mxu0
    %1752 = vmatprep.mubr.f32.mxu0 0.0
    %1753 = vmatmul.mubr.f32.gmra.mrb[0].mxu0 %v1588
    %v1754 = vpop.f32.mrb[0].mxu0
    %v1755 = vadd.f32 0.0, %v1754
    %v1756 = vpop.f32.mrb[0].mxu0
    %1757 = vmatprep.mubr.f32.mxu0 0.0
    %1758 = vmatmul.mubr.f32.gmra.mrb[0].mxu0 %v1590
    %v1759 = vpop.f32.mrb[0].mxu0
    %v1760 = vadd.f32 0.0, %v1759
    %v1761 = vpop.f32.mrb[0].mxu0
    %1762 = vmatprep.mubr.f32.mxu0 0.0
    %1763 = vmatmul.mubr.f32.gmra.mrb[0].mxu0 %v1592
    %v1764 = vpop.f32.mrb[0].mxu0
    %v1765 = vadd.f32 0.0, %v1764
    %v1766 = vpop.f32.mrb[0].mxu0
    %1767 = vmatprep.mubr.f32.mxu0 0.0
    %1768 = vmatmul.mubr.f32.gmra.mrb[0].mxu0 %v1594
    %v1769 = vpop.f32.mrb[0].mxu0
    %v1770 = vadd.f32 0.0, %v1769
    %v1771 = vpop.f32.mrb[0].mxu0
    %1772 = vmatprep.mubr.f32.mxu0 0.0
    %1773 = vmatmul.mubr.f32.gmra.mrb[0].mxu0 %v1596
    %v1774 = vpop.f32.mrb[0].mxu0
    %v1775 = vadd.f32 0.0, %v1774
    %v1776 = vpop.f32.mrb[0].mxu0
    %1777 = vmatprep.mubr.f32.mxu0 0.0
    %1778 = vmatmul.mubr.f32.gmra.mrb[0].mxu0 %v1598
    %v1779 = vpop.f32.mrb[0].mxu0
    %v1780 = vadd.f32 0.0, %v1779
    %v1781 = vpop.f32.mrb[0].mxu0
    %1782 = vmatprep.mubr.f32.mxu0 0.0
    %1783 = vmatmul.mubr.f32.gmra.mrb[0].mxu0 %v1600
    %v1784 = vpop.f32.mrb[0].mxu0
    %v1785 = vadd.f32 0.0, %v1784
    %v1786 = vpop.f32.mrb[0].mxu0
    %1787 = vmatprep.mubr.f32.mxu0 0.0
    %1788 = vmatmul.mubr.f32.gmra.mrb[0].mxu0 %v1602
    %v1789 = vpop.f32.mrb[0].mxu0
    %v1790 = vadd.f32 0.0, %v1789
    %v1791 = vpop.f32.mrb[0].mxu0
    %1792 = vmatprep.mubr.f32.mxu0 0.0
    %1793 = vmatmul.mubr.f32.gmra.mrb[0].mxu0 %v1604
    %v1794 = vpop.f32.mrb[0].mxu0
    %v1795 = vadd.f32 0.0, %v1794
    %v1796 = vpop.f32.mrb[0].mxu0
    %1797 = vmatprep.mubr.f32.mxu0 0.0
    %1798 = vmatmul.mubr.f32.gmra.mrb[0].mxu0 %v1606
    %v1799 = vpop.f32.mrb[0].mxu0
    %v1800 = vadd.f32 0.0, %v1799
    %v1801 = vpop.f32.mrb[0].mxu0
    %1802 = vmatprep.mubr.f32.mxu0 0.0
    %1803 = vmatmul.mubr.f32.gmra.mrb[0].mxu0 %v1608
    %v1804 = vpop.f32.mrb[0].mxu0
    %v1805 = vadd.f32 0.0, %v1804
    %v1806 = vpop.f32.mrb[0].mxu0
    %1807 = vmatprep.mubr.f32.mxu0 0.0
    %1808 = vmatmul.mubr.f32.gmra.mrb[0].mxu0 %v1610
    %v1809 = vpop.f32.mrb[0].mxu0
    %v1810 = vadd.f32 0.0, %v1809
    %v1811 = vpop.f32.mrb[0].mxu0
    %1812 = vmatprep.mubr.f32.mxu0 0.0
    %1813 = vmatmul.mubr.f32.gmra.mrb[0].mxu0 %v1612
    %v1814 = vpop.f32.mrb[0].mxu0
    %v1815 = vadd.f32 0.0, %v1814
    %v1816 = vpop.f32.mrb[0].mxu0
    %1817 = vmatprep.mubr.f32.mxu0 0.0
    %1818 = vmatmul.mubr.f32.gmra.mrb[0].mxu0 %v1614
    %v1819 = vpop.f32.mrb[0].mxu0
    %v1820 = vadd.f32 0.0, %v1819
    %v1821 = vpop.f32.mrb[0].mxu0
    %1822 = vmatprep.mubr.f32.mxu0 0.0
    %1823 = vmatmul.mubr.f32.gmra.mrb[0].mxu0 %v1616
    %v1824 = vpop.f32.mrb[0].mxu0
    %v1825 = vadd.f32 0.0, %v1824
    %v1826 = vpop.f32.mrb[0].mxu0
    %1827 = vmatprep.mubr.f32.mxu0 0.0
    %1828 = vmatmul.mubr.f32.gmra.mrb[0].mxu0 %v1618
    %v1829 = vpop.f32.mrb[0].mxu0
    %v1830 = vadd.f32 0.0, %v1829
    %v1831 = vpop.f32.mrb[0].mxu0
    %1832 = vmatprep.mubr.f32.mxu0 0.0
    %1833 = vmatmul.mubr.f32.gmra.mrb[0].mxu0 %v1620
    %v1834 = vpop.f32.mrb[0].mxu0
    %v1835 = vadd.f32 0.0, %v1834
    %v1836 = vpop.f32.mrb[0].mxu0
    %1837 = vmatprep.mubr.f32.mxu0 0.0
    %1838 = vmatmul.mubr.f32.gmra.mrb[0].mxu0 %v1622
    %v1839 = vpop.f32.mrb[0].mxu0
    %v1840 = vadd.f32 0.0, %v1839
    %v1841 = vpop.f32.mrb[0].mxu0
    %1842 = vmatprep.mubr.f32.mxu0 0.0
    %1843 = vmatmul.mubr.f32.gmra.mrb[0].mxu0 %v1624
    %v1844 = vpop.f32.mrb[0].mxu0
    %v1845 = vadd.f32 0.0, %v1844
    %v1846 = vpop.f32.mrb[0].mxu0
    %1847 = vmatprep.mubr.f32.mxu0 0.0
    %1848 = vmatmul.mubr.f32.gmra.mrb[0].mxu0 %v1626
    %v1849 = vpop.f32.mrb[0].mxu0
    %v1850 = vadd.f32 0.0, %v1849
    %v1851 = vpop.f32.mrb[0].mxu0
    %1852 = vdwg.mxu0
    %v1853 = vmul.f32 %v796, %v1695
    %v1854 = vmul.f32 %v801, %v1700
    %v1855 = vmul.f32 %v806, %v1705
    %v1856 = vmul.f32 %v811, %v1710
    %v1857 = vmul.f32 %v816, %v1715
    %v1858 = vmul.f32 %v821, %v1720
    %v1859 = vmul.f32 %v826, %v1725
    %v1860 = vmul.f32 %v831, %v1730
    %v1861 = vmul.f32 %v836, %v1735
    %v1862 = vmul.f32 %v841, %v1740
    %v1863 = vmul.f32 %v846, %v1745
    %v1864 = vmul.f32 %v851, %v1750
    %v1865 = vmul.f32 %v856, %v1755
    %v1866 = vmul.f32 %v861, %v1760
    %v1867 = vmul.f32 %v866, %v1765
    %v1868 = vmul.f32 %v871, %v1770
    %v1869 = vmul.f32 %v876, %v1775
    %v1870 = vmul.f32 %v881, %v1780
    %v1871 = vmul.f32 %v886, %v1785
    %v1872 = vmul.f32 %v891, %v1790
    %v1873 = vmul.f32 %v896, %v1795
    %v1874 = vmul.f32 %v901, %v1800
    %v1875 = vmul.f32 %v906, %v1805
    %v1876 = vmul.f32 %v911, %v1810
    %v1877 = vmul.f32 %v916, %v1815
    %v1878 = vmul.f32 %v921, %v1820
    %v1879 = vmul.f32 %v926, %v1825
    %v1880 = vmul.f32 %v931, %v1830
    %v1881 = vmul.f32 %v936, %v1835
    %v1882 = vmul.f32 %v941, %v1840
    %v1883 = vmul.f32 %v946, %v1845
    %v1884 = vmul.f32 %v951, %v1850
    %v1885 = vlaneseq
    %v1886 = vshrl.u32 %v1885, 7
    %v1887 = vadd.s32 %v1886, 8
    %v1888 = vld [vmem:[%s2] sm:$0x3]
    %v1889 = vlaneseq
    %v1890 = vshrl.u32 %v1889, 7
    %v1891 = vsub.s32 0, %v1890
    %v1892 = vrot.slane %v1888, %v1891
    %v1893 = vlaneseq
    %v1894 = vshrl.u32 %v1893, 7
    %v1895 = vsub.s32 1, %v1894
    %v1896 = vrot.slane %v1888, %v1895
    %vm1897 = vcmp.eq.s32.totalorder %v1886, %v1892
    %vm1898 = vcmp.eq.s32.totalorder %v1886, %v1896
    %vm1899 = vcmp.eq.s32.totalorder %v1887, %v1892
    %vm1900 = vcmp.eq.s32.totalorder %v1887, %v1896
    %v1901 = vsel %vm1897, 1, 0
    %v1902 = vsel %vm1898, 1, 0
    %v1903 = vsel %vm1899, 1, 0
    %v1904 = vsel %vm1900, 1, 0
    %v1905 = vcvt.s32.f32 %v1901
    %v1906 = vcvt.s32.f32 %v1902
    %v1907 = vcvt.s32.f32 %v1903
    %v1908 = vcvt.s32.f32 %v1904
    %v1909 = vld [vmem:[%s7] sm:$0xff]
    %v1910 = vld [vmem:[%s7 + $0x8] sm:$0xff]
    %v1911 = vld [vmem:[%s7 + $0x10] sm:$0xff]
    %v1912 = vld [vmem:[%s7 + $0x18] sm:$0xff]
    %v1913 = vld [vmem:[%s7 + $0x20] sm:$0xff]
    %v1914 = vld [vmem:[%s7 + $0x28] sm:$0xff]
    %v1915 = vld [vmem:[%s7 + $0x30] sm:$0xff]
    %v1916 = vld [vmem:[%s7 + $0x38] sm:$0xff]
    %v1917 = vld [vmem:[%s7 + $0x40] sm:$0xff]
    %v1918 = vld [vmem:[%s7 + $0x48] sm:$0xff]
    %v1919 = vld [vmem:[%s7 + $0x50] sm:$0xff]
    %v1920 = vld [vmem:[%s7 + $0x58] sm:$0xff]
    %v1921 = vld [vmem:[%s7 + $0x60] sm:$0xff]
    %v1922 = vld [vmem:[%s7 + $0x68] sm:$0xff]
    %v1923 = vld [vmem:[%s7 + $0x70] sm:$0xff]
    %v1924 = vld [vmem:[%s7 + $0x78] sm:$0xff]
    %v1925 = vld [vmem:[%s8] sm:$0x1]
    %v1927 = vlaneseq
    %v1928 = vshrl.u32 %v1927, 7
    %v1929 = vsub.s32 0, %v1928
    %v1930 = vrot.slane %v1925, %v1929
    %1932 = vmatprep.subr.mxu0 0.0
    %1933 = vmatpush1.msra.mxu0 %v1853
    %1934 = vmatprep.subr.mxu0 0.0
    %1935 = vmatpush1.msra.mxu0 %v1854
    %1936 = vmatprep.subr.mxu0 0.0
    %1937 = vmatpush1.msra.mxu0 %v1855
    %1938 = vmatprep.subr.mxu0 0.0
    %1939 = vmatpush1.msra.mxu0 %v1856
    %1940 = vmatprep.subr.mxu0 0.0
    %1941 = vmatpush1.msra.mxu0 %v1857
    %1942 = vmatprep.subr.mxu0 0.0
    %1943 = vmatpush1.msra.mxu0 %v1858
    %1944 = vmatprep.subr.mxu0 0.0
    %1945 = vmatpush1.msra.mxu0 %v1859
    %1946 = vmatprep.subr.mxu0 0.0
    %1947 = vmatpush1.msra.mxu0 %v1860
    %1948 = vmatprep.subr.mxu0 0.0
    %1949 = vmatpush1.msra.mxu0 %v1861
    %1950 = vmatprep.subr.mxu0 0.0
    %1951 = vmatpush1.msra.mxu0 %v1862
    %1952 = vmatprep.subr.mxu0 0.0
    %1953 = vmatpush1.msra.mxu0 %v1863
    %1954 = vmatprep.subr.mxu0 0.0
    %1955 = vmatpush1.msra.mxu0 %v1864
    %1956 = vmatprep.subr.mxu0 0.0
    %1957 = vmatpush1.msra.mxu0 %v1865
    %1958 = vmatprep.subr.mxu0 0.0
    %1959 = vmatpush1.msra.mxu0 %v1866
    %1960 = vmatprep.subr.mxu0 0.0
    %1961 = vmatpush1.msra.mxu0 %v1867
    %1962 = vmatprep.subr.mxu0 0.0
    %1963 = vmatpush1.msra.mxu0 %v1868
    %1964 = vmatprep.subr.mxu0 0.0
    %1965 = vmatpush1.msra.mxu0 %v1869
    %1966 = vmatprep.subr.mxu0 0.0
    %1967 = vmatpush1.msra.mxu0 %v1870
    %1968 = vmatprep.subr.mxu0 0.0
    %1969 = vmatpush1.msra.mxu0 %v1871
    %1970 = vmatprep.subr.mxu0 0.0
    %1971 = vmatpush1.msra.mxu0 %v1872
    %1972 = vmatprep.subr.mxu0 0.0
    %1973 = vmatpush1.msra.mxu0 %v1873
    %1974 = vmatprep.subr.mxu0 0.0
    %1975 = vmatpush1.msra.mxu0 %v1874
    %1976 = vmatprep.subr.mxu0 0.0
    %1977 = vmatpush1.msra.mxu0 %v1875
    %1978 = vmatprep.subr.mxu0 0.0
    %1979 = vmatpush1.msra.mxu0 %v1876
    %1980 = vmatprep.subr.mxu0 0.0
    %1981 = vmatpush1.msra.mxu0 %v1877
    %1982 = vmatprep.subr.mxu0 0.0
    %1983 = vmatpush1.msra.mxu0 %v1878
    %1984 = vmatprep.subr.mxu0 0.0
    %1985 = vmatpush1.msra.mxu0 %v1879
    %1986 = vmatprep.subr.mxu0 0.0
    %1987 = vmatpush1.msra.mxu0 %v1880
    %1988 = vmatprep.subr.mxu0 0.0
    %1989 = vmatpush1.msra.mxu0 %v1881
    %1990 = vmatprep.subr.mxu0 0.0
    %1991 = vmatpush1.msra.mxu0 %v1882
    %1992 = vmatprep.subr.mxu0 0.0
    %1993 = vmatpush1.msra.mxu0 %v1883
    %1994 = vmatprep.subr.mxu0 0.0
    %1995 = vmatpush1.msra.mxu0 %v1884
    %1996 = vmatprep.mubr.f32.mxu0 %v1906
    %1997 = vmatmul.mubr.f32.gmra.mrb[0].mxu0 %v1905
    %v1998 = vpop.f32.mrb[0].mxu0
    %v1999 = vadd.f32 %v1930, %v1998
    %v2000 = vpop.f32.mrb[0].mxu0
    %2001 = vmatprep.mubr.f32.mxu0 %v1908
    %2002 = vmatmul.mubr.f32.gmra.mrb[0].mxu0 %v1907
    %v2003 = vpop.f32.mrb[0].mxu0
    %v2004 = vadd.f32 %v1930, %v2003
    %v2005 = vpop.f32.mrb[0].mxu0
    %2006 = vdwg.mxu0
    %2007 = vmatprep.subr.mxu0 0.0
    %2008 = vmatpush1.msra.mxu0 %v1909
    %2009 = vmatprep.subr.mxu0 0.0
    %2010 = vmatpush1.msra.mxu0 %v1910
    %2011 = vmatprep.subr.mxu0 0.0
    %2012 = vmatpush1.msra.mxu0 %v1911
    %2013 = vmatprep.subr.mxu0 0.0
    %2014 = vmatpush1.msra.mxu0 %v1912
    %2015 = vmatprep.subr.mxu0 0.0
    %2016 = vmatpush1.msra.mxu0 %v1913
    %2017 = vmatprep.subr.mxu0 0.0
    %2018 = vmatpush1.msra.mxu0 %v1914
    %2019 = vmatprep.subr.mxu0 0.0
    %2020 = vmatpush1.msra.mxu0 %v1915
    %2021 = vmatprep.subr.mxu0 0.0
    %2022 = vmatpush1.msra.mxu0 %v1916
    %2023 = vmatprep.subr.mxu0 0.0
    %2024 = vmatpush1.msra.mxu0 %v1917
    %2025 = vmatprep.subr.mxu0 0.0
    %2026 = vmatpush1.msra.mxu0 %v1918
    %2027 = vmatprep.subr.mxu0 0.0
    %2028 = vmatpush1.msra.mxu0 %v1919
    %2029 = vmatprep.subr.mxu0 0.0
    %2030 = vmatpush1.msra.mxu0 %v1920
    %2031 = vmatprep.subr.mxu0 0.0
    %2032 = vmatpush1.msra.mxu0 %v1921
    %2033 = vmatprep.subr.mxu0 0.0
    %2034 = vmatpush1.msra.mxu0 %v1922
    %2035 = vmatprep.subr.mxu0 0.0
    %2036 = vmatpush1.msra.mxu0 %v1923
    %2037 = vmatprep.subr.mxu0 0.0
    %2038 = vmatpush1.msra.mxu0 %v1924
    %2039 = vmatprep.subr.mxu0 0.0
    %2040 = vmatpush1.msra.mxu0 0.0
    %2041 = vmatprep.subr.mxu0 0.0
    %2042 = vmatpush1.msra.mxu0 0.0
    %2043 = vmatprep.subr.mxu0 0.0
    %2044 = vmatpush1.msra.mxu0 0.0
    %2045 = vmatprep.subr.mxu0 0.0
    %2046 = vmatpush1.msra.mxu0 0.0
    %2047 = vmatprep.subr.mxu0 0.0
    %2048 = vmatpush1.msra.mxu0 0.0
    %2049 = vmatprep.subr.mxu0 0.0
    %2050 = vmatpush1.msra.mxu0 0.0
    %2051 = vmatprep.subr.mxu0 0.0
    %2052 = vmatpush1.msra.mxu0 0.0
    %2053 = vmatprep.subr.mxu0 0.0
    %2054 = vmatpush1.msra.mxu0 0.0
    %2055 = vmatprep.subr.mxu0 0.0
    %2056 = vmatpush1.msra.mxu0 0.0
    %2057 = vmatprep.subr.mxu0 0.0
    %2058 = vmatpush1.msra.mxu0 0.0
    %2059 = vmatprep.subr.mxu0 0.0
    %2060 = vmatpush1.msra.mxu0 0.0
    %2061 = vmatprep.subr.mxu0 0.0
    %2062 = vmatpush1.msra.mxu0 0.0
    %2063 = vmatprep.subr.mxu0 0.0
    %2064 = vmatpush1.msra.mxu0 0.0
    %2065 = vmatprep.subr.mxu0 0.0
    %2066 = vmatpush1.msra.mxu0 0.0
    %2067 = vmatprep.subr.mxu0 0.0
    %2068 = vmatpush1.msra.mxu0 0.0
    %2069 = vmatprep.subr.mxu0 0.0
    %2070 = vmatpush1.msra.mxu0 0.0
    %2071 = vmatprep.mubr.f32.mxu0 0.0
    %2072 = vmatmul.mubr.f32.gmra.mrb[0].mxu0 %v33
    %v2073 = vpop.f32.mrb[0].mxu0
    %v2074 = vadd.f32 %v1999, %v2073
    %v2075 = vpop.f32.mrb[0].mxu0
    %2076 = vmatprep.mubr.f32.mxu0 0.0
    %2077 = vmatmul.mubr.f32.gmra.mrb[0].mxu0 %v34
    %v2078 = vpop.f32.mrb[0].mxu0
    %v2079 = vadd.f32 %v2004, %v2078
    %v2080 = vpop.f32.mrb[0].mxu0
    %2081 = vdwg.mxu0
    %vm2082 = vcmp.gt.f32.partialorder %v2074, 0.0
    %vm2083 = vcmp.gt.f32.partialorder %v2079, 0.0
    %v2084 = vmin.f32 %v2074, 0.0
    %v2085 = vmin.f32 %v2079, 0.0
    %v2086 = vmul.f32 %v2084, 1.442695
    %v2087 = vpow.pop %v2086
    %v2088 = vmul.f32 %v2085, 1.442695
    %v2089 = vpow.pop %v2088
    %v2090 = vsub.f32 %v2087, 1.0
    %v2091 = vsub.f32 %v2089, 1.0
    %v2092 = vsel %vm2082, %v2074, %v2090
    %v2093 = vsel %vm2083, %v2079, %v2091
    %2094 = vst [vmem:[#allocation2] sm:$0xff] %v2092
    %2095 = vst [vmem:[#allocation2 + $0x8] sm:$0xff] %v2093
    // Predicated region
    $region38: #{hetsann_forward.1} parent=1 // pred_check
      _
    $region39: #{hetsann_forward.1} parent=1 // pred_check_branch
      %2097 = sbr.rel (0) target = $region41
    $region40: #{hetsann_forward.1} parent=1 // pred_region
      %s2099 = ssub.s32 256, 256
      %2100 = vsyncadd [#allocation3], %s2099
      %s2101 = sshll.u32 [#allocation2], 4
      %s2102 = int_to_ptr.vmem [resolvable:$true] %s2101
      %2107 = dma.vmem_to_hbm [thread:$0]  %s2102, 256, %s9, [#allocation3], 128, 128, 8
    $region41: #{hetsann_forward.1} parent=1 // pred_fallthru
      _
    // Predicated region
    $region42: #{hetsann_forward.1} parent=1 // pred_check
      _
    $region43: #{hetsann_forward.1} parent=1 // pred_check_branch
      %2109 = sbr.rel (0) target = $region45
    $region44: #{hetsann_forward.1} parent=1 // pred_region
      %2110 = dma.done [#allocation3], 256
    $region45: #{hetsann_forward.1} parent=1 // pred_fallthru
      _
    %2111 = vsyncpa [#allocation3], 1

</llo_original>
